<compile_context>
chip_gen: v6e
topology: v6e:2x2x1
jax: 0.10.0
libtpu: 0.0.40
codegen_flags: <defaults>
</compile_context>

<pallas_src>
import functools

import jax
import jax.numpy as jnp
from jax.experimental import pallas as pl
from jax.experimental.pallas import tpu as pltpu

MODEL_FILTER_SIZE = 3
MODEL_GROUP_WIDTH = 8
_EPS = 1e-5
_MXU_DTYPE = jnp.bfloat16     # MXU operand dtype (f32 accumulation everywhere)

VMEM = pltpu.MemorySpace.VMEM


def _vspec():
    return pl.BlockSpec(memory_space=VMEM)


def _fold_bn(v, bn):
    """Training-mode BN folded to scale/shift.  v: (C, M) f32, bn: (C, 2)=[gamma|beta]."""
    mu = jnp.mean(v, axis=1, keepdims=True)
    var = jnp.mean((v - mu) ** 2, axis=1, keepdims=True)       # biased variance
    s = bn[:, 0:1] * jax.lax.rsqrt(var + _EPS)
    t = bn[:, 1:2] - mu * s
    return v * s + t


def _pre_block(x, bn1, w1, bn2):
    """BN1+ReLU -> conv1 (1x1) -> BN2+ReLU.  x: (Ni, M) f32 -> (No, M) f32."""
    y1 = jnp.maximum(_fold_bn(x, bn1), 0.0)
    z = jnp.dot(w1, y1.astype(_MXU_DTYPE), preferred_element_type=jnp.float32)
    return jnp.maximum(_fold_bn(z, bn2), 0.0)


def _post_block(p, wbig, bn3, w3, res, w0):
    """Grouped 3x3 conv (ONE matmul) -> BN3+ReLU -> conv3 (1x1) + residual."""
    c2 = jnp.dot(wbig, p, preferred_element_type=jnp.float32)          # (No, Mo)
    y3 = jnp.maximum(_fold_bn(c2, bn3), 0.0)
    z3 = jnp.dot(w3, y3.astype(_MXU_DTYPE), preferred_element_type=jnp.float32)
    if w0 is None:
        r = res                                                        # f32
    else:
        r = jnp.dot(w0, res.astype(_MXU_DTYPE), preferred_element_type=jnp.float32)
    return z3 + r


# ---------------------------------------------------------------------------
# Fused Pallas kernels (gridless: all activations fit comfortably in VMEM here)
# ---------------------------------------------------------------------------

def tail_pre_call(p_tail, tail_wbig, bn1, w1, bn2):
    """Tail 3x3 conv (as matmul) fused with block0's pre stage.
    Returns (x_in f32 (C0, M), z2 bf16 (No0, M))."""
    C0 = tail_wbig.shape[0]
    M = p_tail.shape[1]
    No = w1.shape[0]

    def kernel(p_ref, wt_ref, bn1_ref, w1_ref, bn2_ref, x_out_ref, z2_ref):
        x = jnp.dot(wt_ref[...], p_ref[...], preferred_element_type=jnp.float32)
        x_out_ref[...] = x
        z2_ref[...] = _pre_block(x, bn1_ref[...], w1_ref[...],
                                 bn2_ref[...]).astype(z2_ref.dtype)

    return pl.pallas_call(
        kernel,
        out_shape=(jax.ShapeDtypeStruct((C0, M), jnp.float32),
                   jax.ShapeDtypeStruct((No, M), _MXU_DTYPE)),
        in_specs=[_vspec()] * 5,
        out_specs=(_vspec(), _vspec()),
    )(p_tail, tail_wbig, bn1, w1, bn2)


def post_pre_call(p, wbig, bn3, w3, res, w0, bn1n, w1n, bn2n):
    """Block i's post stage (grouped conv -> BN3+ReLU -> conv3 + residual)
    fused with block i+1's pre stage.
    Returns (x_in f32 (No_i, Mo), z2 bf16 (No_{i+1}, Mo))."""
    has_proj = w0 is not None
    No_prev = wbig.shape[0]
    Mo = p.shape[1]
    No_next = w1n.shape[0]

    def kernel(*refs):
        if has_proj:
            (p_ref, wb_ref, bn3_ref, w3_ref, r_ref, w0_ref,
             bn1_ref, w1_ref, bn2_ref, x_out_ref, z2_ref) = refs
            w0v = w0_ref[...]
        else:
            (p_ref, wb_ref, bn3_ref, w3_ref, r_ref,
             bn1_ref, w1_ref, bn2_ref, x_out_ref, z2_ref) = refs
            w0v = None
        x = _post_block(p_ref[...], wb_ref[...], bn3_ref[...], w3_ref[...],
                        r_ref[...], w0v)
        x_out_ref[...] = x
        z2_ref[...] = _pre_block(x, bn1_ref[...], w1_ref[...],
                                 bn2_ref[...]).astype(z2_ref.dtype)

    args = [p, wbig, bn3, w3, res] + ([w0] if has_proj else []) + [bn1n, w1n, bn2n]
    return pl.pallas_call(
        kernel,
        out_shape=(jax.ShapeDtypeStruct((No_prev, Mo), jnp.float32),
                   jax.ShapeDtypeStruct((No_next, Mo), _MXU_DTYPE)),
        in_specs=[_vspec()] * len(args),
        out_specs=(_vspec(), _vspec()),
    )(*args)


def post_head_call(p, wbig, bn3, w3, res, w0, head_bn, pool_mat, wlin, bias):
    """Last block's post stage fused with the head:
    final BN+ReLU -> AdaptiveAvgPool2d((1,1)) (as matmul) -> Linear.
    Returns (num_classes, N) f32 (transposed outside)."""
    has_proj = w0 is not None
    ncls = wlin.shape[0]
    Nb = pool_mat.shape[1]

    def kernel(*refs):
        if has_proj:
            (p_ref, wb_ref, bn3_ref, w3_ref, r_ref, w0_ref,
             hbn_ref, pool_ref, w_ref, b_ref, o_ref) = refs
            w0v = w0_ref[...]
        else:
            (p_ref, wb_ref, bn3_ref, w3_ref, r_ref,
             hbn_ref, pool_ref, w_ref, b_ref, o_ref) = refs
            w0v = None
        x = _post_block(p_ref[...], wb_ref[...], bn3_ref[...], w3_ref[...],
                        r_ref[...], w0v)
        y = jnp.maximum(_fold_bn(x, hbn_ref[...]), 0.0)                 # (C, Mo)
        pooled = jnp.dot(y, pool_ref[...],
                         preferred_element_type=jnp.float32)            # (C, N)
        o_ref[...] = jnp.dot(w_ref[...], pooled,
                             preferred_element_type=jnp.float32) + b_ref[...]

    args = ([p, wbig, bn3, w3, res] + ([w0] if has_proj else [])
            + [head_bn, pool_mat, wlin, bias])
    return pl.pallas_call(
        kernel,
        out_shape=jax.ShapeDtypeStruct((ncls, Nb), jnp.float32),
        in_specs=[_vspec()] * len(args),
        out_specs=_vspec(),
    )(*args)


# ---------------------------------------------------------------------------
# Layout plumbing (XLA glue, outside the kernels)
# ---------------------------------------------------------------------------

def im2col_cm(x4, stride, K=MODEL_FILTER_SIZE):
    """x4: (C, N, H, W) -> patches (K*K*C, N*Ho*Wo), zero padding=1, given stride."""
    C, N, H, W = x4.shape
    Ho = (H + 2 - K) // stride + 1
    Wo = (W + 2 - K) // stride + 1
    xp = jnp.pad(x4, ((0, 0), (0, 0), (1, 1), (1, 1)))
    taps = []
    for kh in range(K):
        for kw in range(K):
            taps.append(xp[:, :, kh:kh + (Ho - 1) * stride + 1:stride,
                               kw:kw + (Wo - 1) * stride + 1:stride])
    p = jnp.stack(taps, axis=0)                     # (T, C, N, Ho, Wo)
    return p.reshape(K * K * C, N * Ho * Wo), (Ho, Wo)


def pack_grouped_conv(w, groups):
    """Pack a (grouped) KxK conv weight (Cout, Cin/groups, K, K) into a
    block-diagonal (Cout, K*K*Cin) matrix matching im2col_cm's row order."""
    Cout, cin_g, KH, KW = w.shape
    Cin = groups * cin_g
    cout_g = Cout // groups
    T = KH * KW
    wbig = jnp.zeros((Cout, T, Cin), jnp.float32)
    for g in range(groups):
        wg = w[g * cout_g:(g + 1) * cout_g]                       # (cout_g, cin_g, K, K)
        wg = jnp.transpose(wg, (0, 2, 3, 1)).reshape(cout_g, T, cin_g)
        wbig = wbig.at[g * cout_g:(g + 1) * cout_g, :,
                       g * cin_g:(g + 1) * cin_g].set(wg)
    return wbig.reshape(Cout, T * Cin)


# ---------------------------------------------------------------------------
# Model: parameter construction + forward wiring
# ---------------------------------------------------------------------------

def init_params(key, data_num_channels, model_blocks, model_tail_out_channels,
                model_channels, data_num_classes):
    keys = iter(jax.random.split(key, 256))

    def nrm(shape, scale=0.1):
        return (scale * jax.random.normal(next(keys), shape)).astype(jnp.float32)

    params = {}
    # enc_tail: Conv2d(Cin, C0, 3x3, stride 1, pad 1, bias=False)
    w_tail = nrm((model_tail_out_channels, data_num_channels,
                  MODEL_FILTER_SIZE, MODEL_FILTER_SIZE))
    params['tail_wbig'] = pack_grouped_conv(w_tail, groups=1).astype(_MXU_DTYPE)

    blocks = []
    for stage in range(len(model_channels)):
        Ni = model_tail_out_channels if stage == 0 else model_channels[stage - 1]
        No = model_channels[stage]
        S = 1 if stage == 0 else 2
        cfgs = [(Ni, No, S)] + [(No, No, 1)] * (model_blocks[stage] - 1)
        for (ni, no, s) in cfgs:
            groups = no // MODEL_GROUP_WIDTH
            w2 = nrm((no, no // groups, MODEL_FILTER_SIZE, MODEL_FILTER_SIZE))
            blk = dict(
                stride=s,
                bn1=jnp.stack([1.0 + nrm((ni,)), nrm((ni,))], axis=1),   # (ni, 2)
                w1=nrm((no, ni)).astype(_MXU_DTYPE),
                bn2=jnp.stack([1.0 + nrm((no,)), nrm((no,))], axis=1),
                wbig=pack_grouped_conv(w2, groups).astype(_MXU_DTYPE),
                bn3=jnp.stack([1.0 + nrm((no,)), nrm((no,))], axis=1),
                w3=nrm((no, no)).astype(_MXU_DTYPE),
                w0=(nrm((no, ni)).astype(_MXU_DTYPE)
                    if (ni != no or s > 1) else None),
            )
            blocks.append(blk)
    params['blocks'] = blocks

    Clast = model_channels[-1]
    params['head'] = dict(
        bn=jnp.stack([1.0 + nrm((Clast,)), nrm((Clast,))], axis=1),
        wlin=nrm((data_num_classes, Clast)),
        bias=nrm((data_num_classes, 1)))
    return params


def model_forward(params, x_nchw):
    N, Cin, H, W = x_nchw.shape
    blocks = params['blocks']

    # NCHW -> (C, N, H, W); bf16 MXU-operand copy for the tail's im2col patches.
    x4 = jnp.transpose(x_nchw, (1, 0, 2, 3)).astype(_MXU_DTYPE)
    p_tail, (H, W) = im2col_cm(x4, stride=1)

    # K0: tail conv + block0 pre stage
    blk0 = blocks[0]
    x_in, z2 = tail_pre_call(p_tail, params['tail_wbig'],
                             blk0['bn1'], blk0['w1'], blk0['bn2'])

    out_t = None
    for i, blk in enumerate(blocks):
        s = blk['stride']
        No = z2.shape[0]
        p2, (Ho, Wo) = im2col_cm(z2.reshape(No, N, H, W), stride=s)
        if blk['w0'] is not None:
            # conv0 shortcut: strided 1x1 conv -> subsample here, matmul in-kernel
            Ni = x_in.shape[0]
            res = x_in.reshape(Ni, N, H, W)[:, :, ::s, ::s].reshape(Ni, N * Ho * Wo)
        else:
            res = x_in

        if i + 1 < len(blocks):
            nxt = blocks[i + 1]
            x_in, z2 = post_pre_call(p2, blk['wbig'], blk['bn3'], blk['w3'],
                                     res, blk['w0'],
                                     nxt['bn1'], nxt['w1'], nxt['bn2'])
        else:
            h = params['head']
            HWo = Ho * Wo
            pool_mat = (jnp.repeat(jnp.eye(N, dtype=jnp.float32), HWo, axis=0)
                        / float(HWo))                            # (N*HWo, N)
            out_t = post_head_call(p2, blk['wbig'], blk['bn3'], blk['w3'],
                                   res, blk['w0'],
                                   h['bn'], pool_mat, h['wlin'], h['bias'])
        H, W = Ho, Wo

    return out_t.T                                   # (N, num_classes)


if __name__ == "__main__":
    key = jax.random.PRNGKey(0)
    kx, kp = jax.random.split(key)

    # Model config: 4 input channels, tail->8 channels, stages [8, 16],
    # one block per stage, 10 classes, group width 8, filter size 3.
    data_num_channels = 4
    model_blocks = [1, 1]
    model_tail_out_channels = 8
    model_channels = [8, 16]
    data_num_classes = 10

    x = jax.random.normal(kx, (2, data_num_channels, 16, 16), dtype=jnp.float32)
    params = init_params(kp, data_num_channels, model_blocks,
                         model_tail_out_channels, model_channels,
                         data_num_classes)

    fwd = jax.jit(functools.partial(model_forward, params))
    y = fwd(x)
    jax.block_until_ready(y)
    assert y.shape == (2, data_num_classes), y.shape
    assert jnp.all(jnp.isfinite(y))
    print("KERNEL_OK")
</pallas_src>

<mosaic_0001>
module attributes {stable_mosaic.version = 11 : i64} {
  func.func @kernel(%arg0: memref<36x512xbf16, #tpu.memory_space<vmem>>, %arg1: memref<8x36xbf16, #tpu.memory_space<vmem>>, %arg2: memref<8x2xf32, #tpu.memory_space<vmem>>, %arg3: memref<8x8xbf16, #tpu.memory_space<vmem>>, %arg4: memref<8x2xf32, #tpu.memory_space<vmem>>, %arg5: memref<8x512xf32, #tpu.memory_space<vmem>>, %arg6: memref<8x512xbf16, #tpu.memory_space<vmem>>) attributes {dimension_semantics = [], scalar_prefetch = 0 : i64, scratch_operands = 0 : i64, tpu.core_type = #tpu.core_type<tc>} {
    %c0 = arith.constant 0 : index
    %c0_0 = arith.constant 0 : index
    %0 = vector.load %arg1[%c0, %c0_0] : memref<8x36xbf16, #tpu.memory_space<vmem>>, vector<8x36xbf16>
    %c0_1 = arith.constant 0 : index
    %c0_2 = arith.constant 0 : index
    %1 = vector.load %arg0[%c0_1, %c0_2] : memref<36x512xbf16, #tpu.memory_space<vmem>>, vector<36x512xbf16>
    %cst = arith.constant dense<0.000000e+00> : vector<8x512xf32>
    %2 = tpu.matmul %0, %1, %cst {dimension_numbers = #tpu.dot_dimension_numbers<[1], [0], [0], [1], [0, 0, 1, 1], [], []>} : vector<8x36xbf16>, vector<36x512xbf16>, vector<8x512xf32> -> vector<8x512xf32>
    %c0_3 = arith.constant 0 : index
    %c0_4 = arith.constant 0 : index
    %3 = vector.load %arg5[%c0_3, %c0_4] : memref<8x512xf32, #tpu.memory_space<vmem>>, vector<8x512xf32>
    tpu.vector_store %arg5[%c0_3, %c0_4], %2 {strides = array<i32>} : memref<8x512xf32, #tpu.memory_space<vmem>>, vector<8x512xf32>,
    %c0_5 = arith.constant 0 : index
    %c0_6 = arith.constant 0 : index
    %4 = vector.load %arg2[%c0_5, %c0_6] : memref<8x2xf32, #tpu.memory_space<vmem>>, vector<8x2xf32>
    %c0_7 = arith.constant 0 : index
    %c0_8 = arith.constant 0 : index
    %5 = vector.load %arg3[%c0_7, %c0_8] : memref<8x8xbf16, #tpu.memory_space<vmem>>, vector<8x8xbf16>
    %c0_9 = arith.constant 0 : index
    %c0_10 = arith.constant 0 : index
    %6 = vector.load %arg4[%c0_9, %c0_10] : memref<8x2xf32, #tpu.memory_space<vmem>>, vector<8x2xf32>
    %cst_11 = arith.constant dense<0.000000e+00> : vector<8xf32>
    %7 = vector.multi_reduction <add>, %2, %cst_11 [1] : vector<8x512xf32> to vector<8xf32>
    %8 = vector.shape_cast %7 : vector<8xf32> to vector<8x1xf32>
    %cst_12 = arith.constant 5.120000e+02 : f32
    %9 = vector.broadcast %cst_12 : f32 to vector<8x1xf32>
    %10 = arith.divf %8, %9 : vector<8x1xf32>
    %11 = vector.broadcast %10 : vector<8x1xf32> to vector<8x512xf32>
    %12 = arith.subf %2, %11 : vector<8x512xf32>
    %13 = arith.mulf %12, %12 : vector<8x512xf32>
    %cst_13 = arith.constant dense<0.000000e+00> : vector<8xf32>
    %14 = vector.multi_reduction <add>, %13, %cst_13 [1] : vector<8x512xf32> to vector<8xf32>
    %15 = vector.shape_cast %14 : vector<8xf32> to vector<8x1xf32>
    %cst_14 = arith.constant 5.120000e+02 : f32
    %16 = vector.broadcast %cst_14 : f32 to vector<8x1xf32>
    %17 = arith.divf %15, %16 : vector<8x1xf32>
    %18 = vector.extract_strided_slice %4 {offsets = [0, 0], sizes = [8, 1], strides = [1, 1]} : vector<8x2xf32> to vector<8x1xf32>
    %cst_15 = arith.constant 9.99999974E-6 : f32
    %19 = vector.broadcast %cst_15 : f32 to vector<8x1xf32>
    %20 = arith.addf %17, %19 : vector<8x1xf32>
    %21 = math.rsqrt %20 : vector<8x1xf32>
    %22 = arith.mulf %18, %21 : vector<8x1xf32>
    %23 = vector.extract_strided_slice %4 {offsets = [0, 1], sizes = [8, 1], strides = [1, 1]} : vector<8x2xf32> to vector<8x1xf32>
    %24 = arith.mulf %10, %22 : vector<8x1xf32>
    %25 = arith.subf %23, %24 : vector<8x1xf32>
    %26 = vector.broadcast %22 : vector<8x1xf32> to vector<8x512xf32>
    %27 = arith.mulf %2, %26 : vector<8x512xf32>
    %28 = vector.broadcast %25 : vector<8x1xf32> to vector<8x512xf32>
    %29 = arith.addf %27, %28 : vector<8x512xf32>
    %cst_16 = arith.constant 0.000000e+00 : f32
    %30 = vector.broadcast %cst_16 : f32 to vector<8x512xf32>
    %31 = arith.maximumf %29, %30 : vector<8x512xf32>
    %32 = arith.truncf %31 : vector<8x512xf32> to vector<8x512xbf16>
    %cst_17 = arith.constant dense<0.000000e+00> : vector<8x512xf32>
    %33 = tpu.matmul %5, %32, %cst_17 {dimension_numbers = #tpu.dot_dimension_numbers<[1], [0], [0], [1], [0, 0, 1, 1], [], []>} : vector<8x8xbf16>, vector<8x512xbf16>, vector<8x512xf32> -> vector<8x512xf32>
    %cst_18 = arith.constant dense<0.000000e+00> : vector<8xf32>
    %34 = vector.multi_reduction <add>, %33, %cst_18 [1] : vector<8x512xf32> to vector<8xf32>
    %35 = vector.shape_cast %34 : vector<8xf32> to vector<8x1xf32>
    %cst_19 = arith.constant 5.120000e+02 : f32
    %36 = vector.broadcast %cst_19 : f32 to vector<8x1xf32>
    %37 = arith.divf %35, %36 : vector<8x1xf32>
    %38 = vector.broadcast %37 : vector<8x1xf32> to vector<8x512xf32>
    %39 = arith.subf %33, %38 : vector<8x512xf32>
    %40 = arith.mulf %39, %39 : vector<8x512xf32>
    %cst_20 = arith.constant dense<0.000000e+00> : vector<8xf32>
    %41 = vector.multi_reduction <add>, %40, %cst_20 [1] : vector<8x512xf32> to vector<8xf32>
    %42 = vector.shape_cast %41 : vector<8xf32> to vector<8x1xf32>
    %cst_21 = arith.constant 5.120000e+02 : f32
    %43 = vector.broadcast %cst_21 : f32 to vector<8x1xf32>
    %44 = arith.divf %42, %43 : vector<8x1xf32>
    %45 = vector.extract_strided_slice %6 {offsets = [0, 0], sizes = [8, 1], strides = [1, 1]} : vector<8x2xf32> to vector<8x1xf32>
    %cst_22 = arith.constant 9.99999974E-6 : f32
    %46 = vector.broadcast %cst_22 : f32 to vector<8x1xf32>
    %47 = arith.addf %44, %46 : vector<8x1xf32>
    %48 = math.rsqrt %47 : vector<8x1xf32>
    %49 = arith.mulf %45, %48 : vector<8x1xf32>
    %50 = vector.extract_strided_slice %6 {offsets = [0, 1], sizes = [8, 1], strides = [1, 1]} : vector<8x2xf32> to vector<8x1xf32>
    %51 = arith.mulf %37, %49 : vector<8x1xf32>
    %52 = arith.subf %50, %51 : vector<8x1xf32>
    %53 = vector.broadcast %49 : vector<8x1xf32> to vector<8x512xf32>
    %54 = arith.mulf %33, %53 : vector<8x512xf32>
    %55 = vector.broadcast %52 : vector<8x1xf32> to vector<8x512xf32>
    %56 = arith.addf %54, %55 : vector<8x512xf32>
    %cst_23 = arith.constant 0.000000e+00 : f32
    %57 = vector.broadcast %cst_23 : f32 to vector<8x512xf32>
    %58 = arith.maximumf %56, %57 : vector<8x512xf32>
    %59 = arith.truncf %58 : vector<8x512xf32> to vector<8x512xbf16>
    %c0_24 = arith.constant 0 : index
    %c0_25 = arith.constant 0 : index
    %60 = vector.load %arg6[%c0_24, %c0_25] : memref<8x512xbf16, #tpu.memory_space<vmem>>, vector<8x512xbf16>
    tpu.vector_store %arg6[%c0_24, %c0_25], %59 {strides = array<i32>} : memref<8x512xbf16, #tpu.memory_space<vmem>>, vector<8x512xbf16>,
    return
  }
}

module attributes {stable_mosaic.version = 11 : i64} {
  func.func @kernel(%arg0: memref<72x512xbf16, #tpu.memory_space<vmem>>, %arg1: memref<8x72xbf16, #tpu.memory_space<vmem>>, %arg2: memref<8x2xf32, #tpu.memory_space<vmem>>, %arg3: memref<8x8xbf16, #tpu.memory_space<vmem>>, %arg4: memref<8x512xf32, #tpu.memory_space<vmem>>, %arg5: memref<8x2xf32, #tpu.memory_space<vmem>>, %arg6: memref<16x8xbf16, #tpu.memory_space<vmem>>, %arg7: memref<16x2xf32, #tpu.memory_space<vmem>>, %arg8: memref<8x512xf32, #tpu.memory_space<vmem>>, %arg9: memref<16x512xbf16, #tpu.memory_space<vmem>>) attributes {dimension_semantics = [], scalar_prefetch = 0 : i64, scratch_operands = 0 : i64, tpu.core_type = #tpu.core_type<tc>} {
    %c0 = arith.constant 0 : index
    %c0_0 = arith.constant 0 : index
    %0 = vector.load %arg0[%c0, %c0_0] : memref<72x512xbf16, #tpu.memory_space<vmem>>, vector<72x512xbf16>
    %c0_1 = arith.constant 0 : index
    %c0_2 = arith.constant 0 : index
    %1 = vector.load %arg1[%c0_1, %c0_2] : memref<8x72xbf16, #tpu.memory_space<vmem>>, vector<8x72xbf16>
    %c0_3 = arith.constant 0 : index
    %c0_4 = arith.constant 0 : index
    %2 = vector.load %arg2[%c0_3, %c0_4] : memref<8x2xf32, #tpu.memory_space<vmem>>, vector<8x2xf32>
    %c0_5 = arith.constant 0 : index
    %c0_6 = arith.constant 0 : index
    %3 = vector.load %arg3[%c0_5, %c0_6] : memref<8x8xbf16, #tpu.memory_space<vmem>>, vector<8x8xbf16>
    %c0_7 = arith.constant 0 : index
    %c0_8 = arith.constant 0 : index
    %4 = vector.load %arg4[%c0_7, %c0_8] : memref<8x512xf32, #tpu.memory_space<vmem>>, vector<8x512xf32>
    %cst = arith.constant dense<0.000000e+00> : vector<8x512xf32>
    %5 = tpu.matmul %1, %0, %cst {dimension_numbers = #tpu.dot_dimension_numbers<[1], [0], [0], [1], [0, 0, 1, 1], [], []>} : vector<8x72xbf16>, vector<72x512xbf16>, vector<8x512xf32> -> vector<8x512xf32>
    %cst_9 = arith.constant dense<0.000000e+00> : vector<8xf32>
    %6 = vector.multi_reduction <add>, %5, %cst_9 [1] : vector<8x512xf32> to vector<8xf32>
    %7 = vector.shape_cast %6 : vector<8xf32> to vector<8x1xf32>
    %cst_10 = arith.constant 5.120000e+02 : f32
    %8 = vector.broadcast %cst_10 : f32 to vector<8x1xf32>
    %9 = arith.divf %7, %8 : vector<8x1xf32>
    %10 = vector.broadcast %9 : vector<8x1xf32> to vector<8x512xf32>
    %11 = arith.subf %5, %10 : vector<8x512xf32>
    %12 = arith.mulf %11, %11 : vector<8x512xf32>
    %cst_11 = arith.constant dense<0.000000e+00> : vector<8xf32>
    %13 = vector.multi_reduction <add>, %12, %cst_11 [1] : vector<8x512xf32> to vector<8xf32>
    %14 = vector.shape_cast %13 : vector<8xf32> to vector<8x1xf32>
    %cst_12 = arith.constant 5.120000e+02 : f32
    %15 = vector.broadcast %cst_12 : f32 to vector<8x1xf32>
    %16 = arith.divf %14, %15 : vector<8x1xf32>
    %17 = vector.extract_strided_slice %2 {offsets = [0, 0], sizes = [8, 1], strides = [1, 1]} : vector<8x2xf32> to vector<8x1xf32>
    %cst_13 = arith.constant 9.99999974E-6 : f32
    %18 = vector.broadcast %cst_13 : f32 to vector<8x1xf32>
    %19 = arith.addf %16, %18 : vector<8x1xf32>
    %20 = math.rsqrt %19 : vector<8x1xf32>
    %21 = arith.mulf %17, %20 : vector<8x1xf32>
    %22 = vector.extract_strided_slice %2 {offsets = [0, 1], sizes = [8, 1], strides = [1, 1]} : vector<8x2xf32> to vector<8x1xf32>
    %23 = arith.mulf %9, %21 : vector<8x1xf32>
    %24 = arith.subf %22, %23 : vector<8x1xf32>
    %25 = vector.broadcast %21 : vector<8x1xf32> to vector<8x512xf32>
    %26 = arith.mulf %5, %25 : vector<8x512xf32>
    %27 = vector.broadcast %24 : vector<8x1xf32> to vector<8x512xf32>
    %28 = arith.addf %26, %27 : vector<8x512xf32>
    %cst_14 = arith.constant 0.000000e+00 : f32
    %29 = vector.broadcast %cst_14 : f32 to vector<8x512xf32>
    %30 = arith.maximumf %28, %29 : vector<8x512xf32>
    %31 = arith.truncf %30 : vector<8x512xf32> to vector<8x512xbf16>
    %cst_15 = arith.constant dense<0.000000e+00> : vector<8x512xf32>
    %32 = tpu.matmul %3, %31, %cst_15 {dimension_numbers = #tpu.dot_dimension_numbers<[1], [0], [0], [1], [0, 0, 1, 1], [], []>} : vector<8x8xbf16>, vector<8x512xbf16>, vector<8x512xf32> -> vector<8x512xf32>
    %33 = arith.addf %32, %4 : vector<8x512xf32>
    %c0_16 = arith.constant 0 : index
    %c0_17 = arith.constant 0 : index
    %34 = vector.load %arg8[%c0_16, %c0_17] : memref<8x512xf32, #tpu.memory_space<vmem>>, vector<8x512xf32>
    tpu.vector_store %arg8[%c0_16, %c0_17], %33 {strides = array<i32>} : memref<8x512xf32, #tpu.memory_space<vmem>>, vector<8x512xf32>,
    %c0_18 = arith.constant 0 : index
    %c0_19 = arith.constant 0 : index
    %35 = vector.load %arg5[%c0_18, %c0_19] : memref<8x2xf32, #tpu.memory_space<vmem>>, vector<8x2xf32>
    %c0_20 = arith.constant 0 : index
    %c0_21 = arith.constant 0 : index
    %36 = vector.load %arg6[%c0_20, %c0_21] : memref<16x8xbf16, #tpu.memory_space<vmem>>, vector<16x8xbf16>
    %c0_22 = arith.constant 0 : index
    %c0_23 = arith.constant 0 : index
    %37 = vector.load %arg7[%c0_22, %c0_23] : memref<16x2xf32, #tpu.memory_space<vmem>>, vector<16x2xf32>
    %cst_24 = arith.constant dense<0.000000e+00> : vector<8xf32>
    %38 = vector.multi_reduction <add>, %33, %cst_24 [1] : vector<8x512xf32> to vector<8xf32>
    %39 = vector.shape_cast %38 : vector<8xf32> to vector<8x1xf32>
    %cst_25 = arith.constant 5.120000e+02 : f32
    %40 = vector.broadcast %cst_25 : f32 to vector<8x1xf32>
    %41 = arith.divf %39, %40 : vector<8x1xf32>
    %42 = vector.broadcast %41 : vector<8x1xf32> to vector<8x512xf32>
    %43 = arith.subf %33, %42 : vector<8x512xf32>
    %44 = arith.mulf %43, %43 : vector<8x512xf32>
    %cst_26 = arith.constant dense<0.000000e+00> : vector<8xf32>
    %45 = vector.multi_reduction <add>, %44, %cst_26 [1] : vector<8x512xf32> to vector<8xf32>
    %46 = vector.shape_cast %45 : vector<8xf32> to vector<8x1xf32>
    %cst_27 = arith.constant 5.120000e+02 : f32
    %47 = vector.broadcast %cst_27 : f32 to vector<8x1xf32>
    %48 = arith.divf %46, %47 : vector<8x1xf32>
    %49 = vector.extract_strided_slice %35 {offsets = [0, 0], sizes = [8, 1], strides = [1, 1]} : vector<8x2xf32> to vector<8x1xf32>
    %cst_28 = arith.constant 9.99999974E-6 : f32
    %50 = vector.broadcast %cst_28 : f32 to vector<8x1xf32>
    %51 = arith.addf %48, %50 : vector<8x1xf32>
    %52 = math.rsqrt %51 : vector<8x1xf32>
    %53 = arith.mulf %49, %52 : vector<8x1xf32>
    %54 = vector.extract_strided_slice %35 {offsets = [0, 1], sizes = [8, 1], strides = [1, 1]} : vector<8x2xf32> to vector<8x1xf32>
    %55 = arith.mulf %41, %53 : vector<8x1xf32>
    %56 = arith.subf %54, %55 : vector<8x1xf32>
    %57 = vector.broadcast %53 : vector<8x1xf32> to vector<8x512xf32>
    %58 = arith.mulf %33, %57 : vector<8x512xf32>
    %59 = vector.broadcast %56 : vector<8x1xf32> to vector<8x512xf32>
    %60 = arith.addf %58, %59 : vector<8x512xf32>
    %cst_29 = arith.constant 0.000000e+00 : f32
    %61 = vector.broadcast %cst_29 : f32 to vector<8x512xf32>
    %62 = arith.maximumf %60, %61 : vector<8x512xf32>
    %63 = arith.truncf %62 : vector<8x512xf32> to vector<8x512xbf16>
    %cst_30 = arith.constant dense<0.000000e+00> : vector<16x512xf32>
    %64 = tpu.matmul %36, %63, %cst_30 {dimension_numbers = #tpu.dot_dimension_numbers<[1], [0], [0], [1], [0, 0, 1, 1], [], []>} : vector<16x8xbf16>, vector<8x512xbf16>, vector<16x512xf32> -> vector<16x512xf32>
    %cst_31 = arith.constant dense<0.000000e+00> : vector<16xf32>
    %65 = vector.multi_reduction <add>, %64, %cst_31 [1] : vector<16x512xf32> to vector<16xf32>
    %66 = vector.shape_cast %65 : vector<16xf32> to vector<16x1xf32>
    %cst_32 = arith.constant 5.120000e+02 : f32
    %67 = vector.broadcast %cst_32 : f32 to vector<16x1xf32>
    %68 = arith.divf %66, %67 : vector<16x1xf32>
    %69 = vector.broadcast %68 : vector<16x1xf32> to vector<16x512xf32>
    %70 = arith.subf %64, %69 : vector<16x512xf32>
    %71 = arith.mulf %70, %70 : vector<16x512xf32>
    %cst_33 = arith.constant dense<0.000000e+00> : vector<16xf32>
    %72 = vector.multi_reduction <add>, %71, %cst_33 [1] : vector<16x512xf32> to vector<16xf32>
    %73 = vector.shape_cast %72 : vector<16xf32> to vector<16x1xf32>
    %cst_34 = arith.constant 5.120000e+02 : f32
    %74 = vector.broadcast %cst_34 : f32 to vector<16x1xf32>
    %75 = arith.divf %73, %74 : vector<16x1xf32>
    %76 = vector.extract_strided_slice %37 {offsets = [0, 0], sizes = [16, 1], strides = [1, 1]} : vector<16x2xf32> to vector<16x1xf32>
    %cst_35 = arith.constant 9.99999974E-6 : f32
    %77 = vector.broadcast %cst_35 : f32 to vector<16x1xf32>
    %78 = arith.addf %75, %77 : vector<16x1xf32>
    %79 = math.rsqrt %78 : vector<16x1xf32>
    %80 = arith.mulf %76, %79 : vector<16x1xf32>
    %81 = vector.extract_strided_slice %37 {offsets = [0, 1], sizes = [16, 1], strides = [1, 1]} : vector<16x2xf32> to vector<16x1xf32>
    %82 = arith.mulf %68, %80 : vector<16x1xf32>
    %83 = arith.subf %81, %82 : vector<16x1xf32>
    %84 = vector.broadcast %80 : vector<16x1xf32> to vector<16x512xf32>
    %85 = arith.mulf %64, %84 : vector<16x512xf32>
    %86 = vector.broadcast %83 : vector<16x1xf32> to vector<16x512xf32>
    %87 = arith.addf %85, %86 : vector<16x512xf32>
    %cst_36 = arith.constant 0.000000e+00 : f32
    %88 = vector.broadcast %cst_36 : f32 to vector<16x512xf32>
    %89 = arith.maximumf %87, %88 : vector<16x512xf32>
    %90 = arith.truncf %89 : vector<16x512xf32> to vector<16x512xbf16>
    %c0_37 = arith.constant 0 : index
    %c0_38 = arith.constant 0 : index
    %91 = vector.load %arg9[%c0_37, %c0_38] : memref<16x512xbf16, #tpu.memory_space<vmem>>, vector<16x512xbf16>
    tpu.vector_store %arg9[%c0_37, %c0_38], %90 {strides = array<i32>} : memref<16x512xbf16, #tpu.memory_space<vmem>>, vector<16x512xbf16>,
    return
  }
}

module attributes {stable_mosaic.version = 11 : i64} {
  func.func @kernel(%arg0: memref<144x128xbf16, #tpu.memory_space<vmem>>, %arg1: memref<16x144xbf16, #tpu.memory_space<vmem>>, %arg2: memref<16x2xf32, #tpu.memory_space<vmem>>, %arg3: memref<16x16xbf16, #tpu.memory_space<vmem>>, %arg4: memref<8x128xf32, #tpu.memory_space<vmem>>, %arg5: memref<16x8xbf16, #tpu.memory_space<vmem>>, %arg6: memref<16x2xf32, #tpu.memory_space<vmem>>, %arg7: memref<128x2xf32, #tpu.memory_space<vmem>>, %arg8: memref<10x16xf32, #tpu.memory_space<vmem>>, %arg9: memref<10x1xf32, #tpu.memory_space<vmem>>, %arg10: memref<10x2xf32, #tpu.memory_space<vmem>>) attributes {dimension_semantics = [], scalar_prefetch = 0 : i64, scratch_operands = 0 : i64, tpu.core_type = #tpu.core_type<tc>} {
    %c0 = arith.constant 0 : index
    %c0_0 = arith.constant 0 : index
    %0 = vector.load %arg5[%c0, %c0_0] : memref<16x8xbf16, #tpu.memory_space<vmem>>, vector<16x8xbf16>
    %c0_1 = arith.constant 0 : index
    %c0_2 = arith.constant 0 : index
    %1 = vector.load %arg0[%c0_1, %c0_2] : memref<144x128xbf16, #tpu.memory_space<vmem>>, vector<144x128xbf16>
    %c0_3 = arith.constant 0 : index
    %c0_4 = arith.constant 0 : index
    %2 = vector.load %arg1[%c0_3, %c0_4] : memref<16x144xbf16, #tpu.memory_space<vmem>>, vector<16x144xbf16>
    %c0_5 = arith.constant 0 : index
    %c0_6 = arith.constant 0 : index
    %3 = vector.load %arg2[%c0_5, %c0_6] : memref<16x2xf32, #tpu.memory_space<vmem>>, vector<16x2xf32>
    %c0_7 = arith.constant 0 : index
    %c0_8 = arith.constant 0 : index
    %4 = vector.load %arg3[%c0_7, %c0_8] : memref<16x16xbf16, #tpu.memory_space<vmem>>, vector<16x16xbf16>
    %c0_9 = arith.constant 0 : index
    %c0_10 = arith.constant 0 : index
    %5 = vector.load %arg4[%c0_9, %c0_10] : memref<8x128xf32, #tpu.memory_space<vmem>>, vector<8x128xf32>
    %cst = arith.constant dense<0.000000e+00> : vector<16x128xf32>
    %6 = tpu.matmul %2, %1, %cst {dimension_numbers = #tpu.dot_dimension_numbers<[1], [0], [0], [1], [0, 0, 1, 1], [], []>} : vector<16x144xbf16>, vector<144x128xbf16>, vector<16x128xf32> -> vector<16x128xf32>
    %cst_11 = arith.constant dense<0.000000e+00> : vector<16xf32>
    %7 = vector.multi_reduction <add>, %6, %cst_11 [1] : vector<16x128xf32> to vector<16xf32>
    %8 = vector.shape_cast %7 : vector<16xf32> to vector<16x1xf32>
    %cst_12 = arith.constant 1.280000e+02 : f32
    %9 = vector.broadcast %cst_12 : f32 to vector<16x1xf32>
    %10 = arith.divf %8, %9 : vector<16x1xf32>
    %11 = vector.broadcast %10 : vector<16x1xf32> to vector<16x128xf32>
    %12 = arith.subf %6, %11 : vector<16x128xf32>
    %13 = arith.mulf %12, %12 : vector<16x128xf32>
    %cst_13 = arith.constant dense<0.000000e+00> : vector<16xf32>
    %14 = vector.multi_reduction <add>, %13, %cst_13 [1] : vector<16x128xf32> to vector<16xf32>
    %15 = vector.shape_cast %14 : vector<16xf32> to vector<16x1xf32>
    %cst_14 = arith.constant 1.280000e+02 : f32
    %16 = vector.broadcast %cst_14 : f32 to vector<16x1xf32>
    %17 = arith.divf %15, %16 : vector<16x1xf32>
    %18 = vector.extract_strided_slice %3 {offsets = [0, 0], sizes = [16, 1], strides = [1, 1]} : vector<16x2xf32> to vector<16x1xf32>
    %cst_15 = arith.constant 9.99999974E-6 : f32
    %19 = vector.broadcast %cst_15 : f32 to vector<16x1xf32>
    %20 = arith.addf %17, %19 : vector<16x1xf32>
    %21 = math.rsqrt %20 : vector<16x1xf32>
    %22 = arith.mulf %18, %21 : vector<16x1xf32>
    %23 = vector.extract_strided_slice %3 {offsets = [0, 1], sizes = [16, 1], strides = [1, 1]} : vector<16x2xf32> to vector<16x1xf32>
    %24 = arith.mulf %10, %22 : vector<16x1xf32>
    %25 = arith.subf %23, %24 : vector<16x1xf32>
    %26 = vector.broadcast %22 : vector<16x1xf32> to vector<16x128xf32>
    %27 = arith.mulf %6, %26 : vector<16x128xf32>
    %28 = vector.broadcast %25 : vector<16x1xf32> to vector<16x128xf32>
    %29 = arith.addf %27, %28 : vector<16x128xf32>
    %cst_16 = arith.constant 0.000000e+00 : f32
    %30 = vector.broadcast %cst_16 : f32 to vector<16x128xf32>
    %31 = arith.maximumf %29, %30 : vector<16x128xf32>
    %32 = arith.truncf %31 : vector<16x128xf32> to vector<16x128xbf16>
    %cst_17 = arith.constant dense<0.000000e+00> : vector<16x128xf32>
    %33 = tpu.matmul %4, %32, %cst_17 {dimension_numbers = #tpu.dot_dimension_numbers<[1], [0], [0], [1], [0, 0, 1, 1], [], []>} : vector<16x16xbf16>, vector<16x128xbf16>, vector<16x128xf32> -> vector<16x128xf32>
    %34 = arith.truncf %5 : vector<8x128xf32> to vector<8x128xbf16>
    %cst_18 = arith.constant dense<0.000000e+00> : vector<16x128xf32>
    %35 = tpu.matmul %0, %34, %cst_18 {dimension_numbers = #tpu.dot_dimension_numbers<[1], [0], [0], [1], [0, 0, 1, 1], [], []>} : vector<16x8xbf16>, vector<8x128xbf16>, vector<16x128xf32> -> vector<16x128xf32>
    %36 = arith.addf %33, %35 : vector<16x128xf32>
    %c0_19 = arith.constant 0 : index
    %c0_20 = arith.constant 0 : index
    %37 = vector.load %arg6[%c0_19, %c0_20] : memref<16x2xf32, #tpu.memory_space<vmem>>, vector<16x2xf32>
    %cst_21 = arith.constant dense<0.000000e+00> : vector<16xf32>
    %38 = vector.multi_reduction <add>, %36, %cst_21 [1] : vector<16x128xf32> to vector<16xf32>
    %39 = vector.shape_cast %38 : vector<16xf32> to vector<16x1xf32>
    %cst_22 = arith.constant 1.280000e+02 : f32
    %40 = vector.broadcast %cst_22 : f32 to vector<16x1xf32>
    %41 = arith.divf %39, %40 : vector<16x1xf32>
    %42 = vector.broadcast %41 : vector<16x1xf32> to vector<16x128xf32>
    %43 = arith.subf %36, %42 : vector<16x128xf32>
    %44 = arith.mulf %43, %43 : vector<16x128xf32>
    %cst_23 = arith.constant dense<0.000000e+00> : vector<16xf32>
    %45 = vector.multi_reduction <add>, %44, %cst_23 [1] : vector<16x128xf32> to vector<16xf32>
    %46 = vector.shape_cast %45 : vector<16xf32> to vector<16x1xf32>
    %cst_24 = arith.constant 1.280000e+02 : f32
    %47 = vector.broadcast %cst_24 : f32 to vector<16x1xf32>
    %48 = arith.divf %46, %47 : vector<16x1xf32>
    %49 = vector.extract_strided_slice %37 {offsets = [0, 0], sizes = [16, 1], strides = [1, 1]} : vector<16x2xf32> to vector<16x1xf32>
    %cst_25 = arith.constant 9.99999974E-6 : f32
    %50 = vector.broadcast %cst_25 : f32 to vector<16x1xf32>
    %51 = arith.addf %48, %50 : vector<16x1xf32>
    %52 = math.rsqrt %51 : vector<16x1xf32>
    %53 = arith.mulf %49, %52 : vector<16x1xf32>
    %54 = vector.extract_strided_slice %37 {offsets = [0, 1], sizes = [16, 1], strides = [1, 1]} : vector<16x2xf32> to vector<16x1xf32>
    %55 = arith.mulf %41, %53 : vector<16x1xf32>
    %56 = arith.subf %54, %55 : vector<16x1xf32>
    %57 = vector.broadcast %53 : vector<16x1xf32> to vector<16x128xf32>
    %58 = arith.mulf %36, %57 : vector<16x128xf32>
    %59 = vector.broadcast %56 : vector<16x1xf32> to vector<16x128xf32>
    %60 = arith.addf %58, %59 : vector<16x128xf32>
    %cst_26 = arith.constant 0.000000e+00 : f32
    %61 = vector.broadcast %cst_26 : f32 to vector<16x128xf32>
    %62 = arith.maximumf %60, %61 : vector<16x128xf32>
    %c0_27 = arith.constant 0 : index
    %c0_28 = arith.constant 0 : index
    %63 = vector.load %arg7[%c0_27, %c0_28] : memref<128x2xf32, #tpu.memory_space<vmem>>, vector<128x2xf32>
    %cst_29 = arith.constant dense<0.000000e+00> : vector<16x2xf32>
    %64 = tpu.matmul %62, %63, %cst_29 {dimension_numbers = #tpu.dot_dimension_numbers<[1], [0], [0], [1], [0, 0, 1, 1], [], []>} : vector<16x128xf32>, vector<128x2xf32>, vector<16x2xf32> -> vector<16x2xf32>
    %c0_30 = arith.constant 0 : index
    %c0_31 = arith.constant 0 : index
    %65 = vector.load %arg8[%c0_30, %c0_31] : memref<10x16xf32, #tpu.memory_space<vmem>>, vector<10x16xf32>
    %cst_32 = arith.constant dense<0.000000e+00> : vector<10x2xf32>
    %66 = tpu.matmul %65, %64, %cst_32 {dimension_numbers = #tpu.dot_dimension_numbers<[1], [0], [0], [1], [0, 0, 1, 1], [], []>} : vector<10x16xf32>, vector<16x2xf32>, vector<10x2xf32> -> vector<10x2xf32>
    %c0_33 = arith.constant 0 : index
    %c0_34 = arith.constant 0 : index
    %67 = vector.load %arg9[%c0_33, %c0_34] : memref<10x1xf32, #tpu.memory_space<vmem>>, vector<10x1xf32>
    %68 = vector.broadcast %67 : vector<10x1xf32> to vector<10x2xf32>
    %69 = arith.addf %66, %68 : vector<10x2xf32>
    %c0_35 = arith.constant 0 : index
    %c0_36 = arith.constant 0 : index
    %70 = vector.load %arg10[%c0_35, %c0_36] : memref<10x2xf32, #tpu.memory_space<vmem>>, vector<10x2xf32>
    tpu.vector_store %arg10[%c0_35, %c0_36], %69 {strides = array<i32>} : memref<10x2xf32, #tpu.memory_space<vmem>>, vector<10x2xf32>,
    return
  }
}

</mosaic_0001>

<llo_original>
// kernel: model_forward.3
$region0: #{model_forward.3}
  #allocation0 [shape = 'u32[]', space=smem, size = 0x4, offset = 0x4, fixed_abs, tag = 'smem constant byte address 0x4 - core index']
  #allocation1 [shape = 'u32[144,128]{1,0:T(1,128)}', space=vmem, size = 0x12000, scoped, tag = 'internal scratch']
  %s0 = inlined_call_operand.vmem [shape: bf16[36,512], index: 0, kind: input, shape index: {}]
  %s1 = inlined_call_operand.vmem [shape: bf16[8,36], index: 1, kind: input, shape index: {}]
  %s2 = inlined_call_operand.vmem [shape: f32[8,2], index: 2, kind: input, shape index: {}]
  %s3 = inlined_call_operand.vmem [shape: bf16[8,8], index: 3, kind: input, shape index: {}]
  %s4 = inlined_call_operand.vmem [shape: f32[8,2], index: 4, kind: input, shape index: {}]
  %s5 = inlined_call_operand.vmem [shape: f32[8,512], index: 5, kind: output, shape index: {0}]
  %s6 = inlined_call_operand.vmem [shape: bf16[8,512], index: 6, kind: output, shape index: {1}]
  %7 = xla_tuple %s5, %s6
  %s8 = sld [smem:[#allocation0]]
  $region38: #{model_forward.3} parent=0
    _
  %s10 = ssub.s32 1, %s8
  %s11 = scalar_select 0, %s10, %s8
  // Predicated region
  $region2: #{model_forward.3} parent=0 // pred_check
    _
  $region3: #{model_forward.3} parent=0 // pred_check_branch
    %13 = sbr.rel (0) target = $region5
  $region4: #{model_forward.3} parent=0 // pred_region
    _
  $region5: #{model_forward.3} parent=0 // pred_fallthru
    _
  // Predicated region
  $region6: #{model_forward.3} parent=0 // pred_check
    _
  $region7: #{model_forward.3} parent=0 // pred_check_branch
    %15 = sbr.rel (0) target = $region9
  $region8: #{model_forward.3} parent=0 // pred_region
    _
  $region9: #{model_forward.3} parent=0 // pred_fallthru
    _
  // Predicated region
  $region10: #{model_forward.3} parent=0 // pred_check
    _
  $region11: #{model_forward.3} parent=0 // pred_check_branch
    %17 = sbr.rel (0) target = $region13
  $region12: #{model_forward.3} parent=0 // pred_region
    _
  $region13: #{model_forward.3} parent=0 // pred_fallthru
    _
  // Predicated region
  $region14: #{model_forward.3} parent=0 // pred_check
    _
  $region15: #{model_forward.3} parent=0 // pred_check_branch
    %19 = sbr.rel (0) target = $region17
  $region16: #{model_forward.3} parent=0 // pred_region
    _
  $region17: #{model_forward.3} parent=0 // pred_fallthru
    _
  // Predicated region
  $region18: #{model_forward.3} parent=0 // pred_check
    _
  $region19: #{model_forward.3} parent=0 // pred_check_branch
    %21 = sbr.rel (0) target = $region21
  $region20: #{model_forward.3} parent=0 // pred_region
    _
  $region21: #{model_forward.3} parent=0 // pred_fallthru
    _
  %v23 = vld [vmem:[%s1] sm:$0xf]
  %v24 = vld [vmem:[%s0] sm:$0xff]
  %v25 = vld [vmem:[%s0 + $0x8] sm:$0xff]
  %v26 = vld [vmem:[%s0 + $0x10] sm:$0xff]
  %v27 = vld [vmem:[%s0 + $0x18] sm:$0xff]
  %v28 = vld [vmem:[%s0 + $0x20] sm:$0xff]
  %v29 = vld [vmem:[%s0 + $0x28] sm:$0xff]
  %v30 = vld [vmem:[%s0 + $0x30] sm:$0xff]
  %v31 = vld [vmem:[%s0 + $0x38] sm:$0xff]
  %v32 = vld [vmem:[%s0 + $0x40] sm:$0x33]
  %v33 = vld [vmem:[%s0 + $0x48] sm:$0x33]
  %v44 = vunpack.c.l.b16 %v24
  %v45 = vunpack.c.h.b16 %v24
  %v46 = vunpack.c.l.b16 %v25
  %v47 = vunpack.c.h.b16 %v25
  %v48 = vunpack.c.l.b16 %v26
  %v49 = vunpack.c.h.b16 %v26
  %v50 = vunpack.c.l.b16 %v27
  %v51 = vunpack.c.h.b16 %v27
  %v52 = vunpack.c.l.b16 %v28
  %v53 = vunpack.c.h.b16 %v28
  %v54 = vunpack.c.l.b16 %v29
  %v55 = vunpack.c.h.b16 %v29
  %v56 = vunpack.c.l.b16 %v30
  %v57 = vunpack.c.h.b16 %v30
  %v58 = vunpack.c.l.b16 %v31
  %v59 = vunpack.c.h.b16 %v31
  %v60 = vunpack.c.l.b16 %v32
  %v61 = vunpack.c.h.b16 %v32
  %v62 = vunpack.c.l.b16 %v33
  %v63 = vunpack.c.h.b16 %v33
  %v64 = vpack.c.b16 %v48, %v44
  %v65 = vpack.c.b16 %v49, %v45
  %v66 = vpack.c.b16 %v50, %v46
  %v67 = vpack.c.b16 %v51, %v47
  %v68 = vpack.c.b16 %v56, %v52
  %v69 = vpack.c.b16 %v57, %v53
  %v70 = vpack.c.b16 %v58, %v54
  %v71 = vpack.c.b16 %v59, %v55
  %v72 = vpack.c.b16 %v60, %v60
  %v73 = vpack.c.b16 %v61, %v61
  %v74 = vpack.c.b16 %v62, %v62
  %v75 = vpack.c.b16 %v63, %v63
  %vm84 = vcmask 293888
  %v86 = vsel %vm84, %v23, 0
  %vm88 = vcmask 1041408
  %v90 = vsel %vm88, %v72, 0
  %v93 = vsel %vm88, %v73, 0
  %v96 = vsel %vm88, %v74, 0
  %v99 = vsel %vm88, %v75, 0
  %101 = vmatprep.subr.bf16.mxu0 0
  %102 = vmatpush1.bf16.msra.mxu0 0
  %103 = vmatprep.subr.bf16.mxu0 0
  %104 = vmatpush1.bf16.msra.mxu0 0
  %105 = vmatprep.subr.bf16.mxu0 0
  %106 = vmatpush1.bf16.msra.mxu0 0
  %107 = vmatprep.subr.bf16.mxu0 0
  %108 = vmatpush1.bf16.msra.mxu0 0
  %109 = vmatprep.subr.bf16.mxu0 0
  %110 = vmatpush1.bf16.msra.mxu0 0
  %111 = vmatprep.subr.bf16.mxu0 %v93
  %112 = vmatpush1.bf16.msra.mxu0 %v90
  %113 = vmatprep.subr.bf16.mxu0 %v69
  %114 = vmatpush1.bf16.msra.mxu0 %v68
  %115 = vmatprep.subr.bf16.mxu0 %v65
  %116 = vmatpush1.bf16.msra.mxu0 %v64
  %117 = vmatprep.subr.bf16.mxu0 0
  %118 = vmatpush2.bf16.msra.mxu0 0
  %119 = vmatprep.subr.bf16.mxu0 0
  %120 = vmatpush2.bf16.msra.mxu0 0
  %121 = vmatprep.subr.bf16.mxu0 0
  %122 = vmatpush2.bf16.msra.mxu0 0
  %123 = vmatprep.subr.bf16.mxu0 0
  %124 = vmatpush2.bf16.msra.mxu0 0
  %125 = vmatprep.subr.bf16.mxu0 0
  %126 = vmatpush2.bf16.msra.mxu0 0
  %127 = vmatprep.subr.bf16.mxu0 0
  %128 = vmatpush2.bf16.msra.mxu0 0
  %129 = vmatprep.subr.bf16.mxu0 0
  %130 = vmatpush2.bf16.msra.mxu0 0
  %131 = vmatprep.subr.bf16.mxu0 0
  %132 = vmatpush2.bf16.msra.mxu0 0
  %133 = vmatprep.mubr.bf16.mxu0 0
  %134 = vmatmul.mubr.bf16.gmra.mxu0 %v86
  %v135 = vpop.f32.mrf.mxu0
  %v136 = vadd.f32 0.0, %v135
  %v137 = vpop.f32.mrf.mxu0
  %v138 = vadd.f32 0.0, %v137
  %v139 = vpop.f32.mrf.mxu0
  %v140 = vpop.f32.mrf.mxu0
  %141 = vdwg.mxu0
  %142 = vmatprep.subr.bf16.mxu0 0
  %143 = vmatpush1.bf16.msra.mxu0 0
  %144 = vmatprep.subr.bf16.mxu0 0
  %145 = vmatpush1.bf16.msra.mxu0 0
  %146 = vmatprep.subr.bf16.mxu0 0
  %147 = vmatpush1.bf16.msra.mxu0 0
  %148 = vmatprep.subr.bf16.mxu0 0
  %149 = vmatpush1.bf16.msra.mxu0 0
  %150 = vmatprep.subr.bf16.mxu0 0
  %151 = vmatpush1.bf16.msra.mxu0 0
  %152 = vmatprep.subr.bf16.mxu0 %v99
  %153 = vmatpush1.bf16.msra.mxu0 %v96
  %154 = vmatprep.subr.bf16.mxu0 %v71
  %155 = vmatpush1.bf16.msra.mxu0 %v70
  %156 = vmatprep.subr.bf16.mxu0 %v67
  %157 = vmatpush1.bf16.msra.mxu0 %v66
  %158 = vmatprep.subr.bf16.mxu0 0
  %159 = vmatpush2.bf16.msra.mxu0 0
  %160 = vmatprep.subr.bf16.mxu0 0
  %161 = vmatpush2.bf16.msra.mxu0 0
  %162 = vmatprep.subr.bf16.mxu0 0
  %163 = vmatpush2.bf16.msra.mxu0 0
  %164 = vmatprep.subr.bf16.mxu0 0
  %165 = vmatpush2.bf16.msra.mxu0 0
  %166 = vmatprep.subr.bf16.mxu0 0
  %167 = vmatpush2.bf16.msra.mxu0 0
  %168 = vmatprep.subr.bf16.mxu0 0
  %169 = vmatpush2.bf16.msra.mxu0 0
  %170 = vmatprep.subr.bf16.mxu0 0
  %171 = vmatpush2.bf16.msra.mxu0 0
  %172 = vmatprep.subr.bf16.mxu0 0
  %173 = vmatpush2.bf16.msra.mxu0 0
  %174 = vmatprep.mubr.bf16.mxu0 0
  %175 = vmatmul.mubr.bf16.gmra.mxu0 %v86
  %v176 = vpop.f32.mrf.mxu0
  %v177 = vadd.f32 0.0, %v176
  %v178 = vpop.f32.mrf.mxu0
  %v179 = vadd.f32 0.0, %v178
  %v180 = vpop.f32.mrf.mxu0
  %v181 = vpop.f32.mrf.mxu0
  %182 = vdwg.mxu0
  %183 = vst [vmem:[%s5] sm:$0xff] %v136
  %184 = vst [vmem:[%s5 + $0x8] sm:$0xff] %v138
  %185 = vst [vmem:[%s5 + $0x10] sm:$0xff] %v177
  %186 = vst [vmem:[%s5 + $0x18] sm:$0xff] %v179
  %v187 = vld [vmem:[%s2] sm:$0xff]
  %v188 = vld [vmem:[%s3] sm:$0xf]
  %v189 = vld [vmem:[%s4] sm:$0xff]
  %v190 = vadd.f32 %v136, %v138
  %v191 = vadd.f32 %v190, %v177
  %v192 = vadd.f32 %v191, %v179
  %193 = vadd.xlane.f32.xlu0 %v192
  %v194 = vpop.xlane.xlu0 %193
  %v195 = vrcp.pop 512.0
  %v196 = vmul.f32 %v194, %v195
  %v197 = vsub.f32 %v136, %v196
  %v198 = vsub.f32 %v138, %v196
  %v199 = vsub.f32 %v177, %v196
  %v200 = vsub.f32 %v179, %v196
  %v201 = vmul.f32 %v197, %v197
  %v202 = vmul.f32 %v198, %v198
  %v203 = vmul.f32 %v199, %v199
  %v204 = vmul.f32 %v200, %v200
  %v205 = vadd.f32 %v201, %v202
  %v206 = vadd.f32 %v205, %v203
  %v207 = vadd.f32 %v206, %v204
  %208 = vadd.xlane.f32.xlu0 %v207
  %v209 = vpop.xlane.xlu0 %208
  %v210 = vmul.f32 %v209, %v195
  %v211 = vadd.f32 %v210, 1e-05
  %v212 = vrsqrt.pop %v211
  %v213 = vmul.f32 %v187, %v212
  %v214 = vmul.f32 %v196, %v213
  %216 = vrot.lane.b32.xlu0 %v214, 1
  %v217 = vpop.permute.xlu0 %216
  %v219 = vsub.f32 %v187, %v217
  %221 = vset.pattern.permute.xlu0 0
  %222 = vperm.xlu0 %221, %v213
  %v223 = vpop.permute.xlu0 %222
  %v225 = vmul.f32 %v136, %v223
  %v226 = vmul.f32 %v138, %v223
  %v227 = vmul.f32 %v177, %v223
  %v228 = vmul.f32 %v179, %v223
  %230 = vset.pattern.permute.xlu0 1
  %231 = vperm.xlu0 %230, %v219
  %v232 = vpop.permute.xlu0 %231
  %v234 = vadd.f32 %v225, %v232
  %v235 = vadd.f32 %v226, %v232
  %v236 = vadd.f32 %v227, %v232
  %v237 = vadd.f32 %v228, %v232
  %v238 = vmax.f32 %v234, 0.0
  %v239 = vmax.f32 %v235, 0.0
  %v240 = vmax.f32 %v236, 0.0
  %v241 = vmax.f32 %v237, 0.0
  %v242 = vpack.c.bf16 %v238, %v238
  %v243 = vpack.c.bf16 %v239, %v239
  %v244 = vpack.c.bf16 %v240, %v240
  %v245 = vpack.c.bf16 %v241, %v241
  %vm246 = vcmask 64512
  %v248 = vsel %vm246, %v188, 0
  %vm250 = vcmask 1043456
  %v252 = vsel %vm250, %v242, 0
  %v255 = vsel %vm250, %v243, 0
  %v258 = vsel %vm250, %v244, 0
  %v261 = vsel %vm250, %v245, 0
  %263 = vmatprep.subr.bf16.mxu0 0
  %264 = vmatpush1.bf16.msra.mxu0 0
  %265 = vmatprep.subr.bf16.mxu0 0
  %266 = vmatpush1.bf16.msra.mxu0 0
  %267 = vmatprep.subr.bf16.mxu0 0
  %268 = vmatpush1.bf16.msra.mxu0 0
  %269 = vmatprep.subr.bf16.mxu0 0
  %270 = vmatpush1.bf16.msra.mxu0 0
  %271 = vmatprep.subr.bf16.mxu0 0
  %272 = vmatpush1.bf16.msra.mxu0 0
  %273 = vmatprep.subr.bf16.mxu0 0
  %274 = vmatpush1.bf16.msra.mxu0 0
  %275 = vmatprep.subr.bf16.mxu0 0
  %276 = vmatpush1.bf16.msra.mxu0 0
  %277 = vmatprep.subr.bf16.mxu0 %v255
  %278 = vmatpush1.bf16.msra.mxu0 %v252
  %279 = vmatprep.subr.bf16.mxu0 0
  %280 = vmatpush2.bf16.msra.mxu0 0
  %281 = vmatprep.subr.bf16.mxu0 0
  %282 = vmatpush2.bf16.msra.mxu0 0
  %283 = vmatprep.subr.bf16.mxu0 0
  %284 = vmatpush2.bf16.msra.mxu0 0
  %285 = vmatprep.subr.bf16.mxu0 0
  %286 = vmatpush2.bf16.msra.mxu0 0
  %287 = vmatprep.subr.bf16.mxu0 0
  %288 = vmatpush2.bf16.msra.mxu0 0
  %289 = vmatprep.subr.bf16.mxu0 0
  %290 = vmatpush2.bf16.msra.mxu0 0
  %291 = vmatprep.subr.bf16.mxu0 0
  %292 = vmatpush2.bf16.msra.mxu0 0
  %293 = vmatprep.subr.bf16.mxu0 0
  %294 = vmatpush2.bf16.msra.mxu0 0
  %295 = vmatprep.mubr.bf16.mxu0 0
  %296 = vmatmul.mubr.bf16.gmra.mxu0 %v248
  %v297 = vpop.f32.mrf.mxu0
  %v298 = vadd.f32 0.0, %v297
  %v299 = vpop.f32.mrf.mxu0
  %v300 = vadd.f32 0.0, %v299
  %v301 = vpop.f32.mrf.mxu0
  %v302 = vpop.f32.mrf.mxu0
  %303 = vdwg.mxu0
  %304 = vmatprep.subr.bf16.mxu0 0
  %305 = vmatpush1.bf16.msra.mxu0 0
  %306 = vmatprep.subr.bf16.mxu0 0
  %307 = vmatpush1.bf16.msra.mxu0 0
  %308 = vmatprep.subr.bf16.mxu0 0
  %309 = vmatpush1.bf16.msra.mxu0 0
  %310 = vmatprep.subr.bf16.mxu0 0
  %311 = vmatpush1.bf16.msra.mxu0 0
  %312 = vmatprep.subr.bf16.mxu0 0
  %313 = vmatpush1.bf16.msra.mxu0 0
  %314 = vmatprep.subr.bf16.mxu0 0
  %315 = vmatpush1.bf16.msra.mxu0 0
  %316 = vmatprep.subr.bf16.mxu0 0
  %317 = vmatpush1.bf16.msra.mxu0 0
  %318 = vmatprep.subr.bf16.mxu0 %v261
  %319 = vmatpush1.bf16.msra.mxu0 %v258
  %320 = vmatprep.subr.bf16.mxu0 0
  %321 = vmatpush2.bf16.msra.mxu0 0
  %322 = vmatprep.subr.bf16.mxu0 0
  %323 = vmatpush2.bf16.msra.mxu0 0
  %324 = vmatprep.subr.bf16.mxu0 0
  %325 = vmatpush2.bf16.msra.mxu0 0
  %326 = vmatprep.subr.bf16.mxu0 0
  %327 = vmatpush2.bf16.msra.mxu0 0
  %328 = vmatprep.subr.bf16.mxu0 0
  %329 = vmatpush2.bf16.msra.mxu0 0
  %330 = vmatprep.subr.bf16.mxu0 0
  %331 = vmatpush2.bf16.msra.mxu0 0
  %332 = vmatprep.subr.bf16.mxu0 0
  %333 = vmatpush2.bf16.msra.mxu0 0
  %334 = vmatprep.subr.bf16.mxu0 0
  %335 = vmatpush2.bf16.msra.mxu0 0
  %336 = vmatprep.mubr.bf16.mxu0 0
  %337 = vmatmul.mubr.bf16.gmra.mxu0 %v248
  %v338 = vpop.f32.mrf.mxu0
  %v339 = vadd.f32 0.0, %v338
  %v340 = vpop.f32.mrf.mxu0
  %v341 = vadd.f32 0.0, %v340
  %v342 = vpop.f32.mrf.mxu0
  %v343 = vpop.f32.mrf.mxu0
  %344 = vdwg.mxu0
  %v345 = vadd.f32 %v298, %v300
  %v346 = vadd.f32 %v345, %v339
  %v347 = vadd.f32 %v346, %v341
  %348 = vadd.xlane.f32.xlu0 %v347
  %v349 = vpop.xlane.xlu0 %348
  %v350 = vmul.f32 %v349, %v195
  %v351 = vsub.f32 %v298, %v350
  %v352 = vsub.f32 %v300, %v350
  %v353 = vsub.f32 %v339, %v350
  %v354 = vsub.f32 %v341, %v350
  %v355 = vmul.f32 %v351, %v351
  %v356 = vmul.f32 %v352, %v352
  %v357 = vmul.f32 %v353, %v353
  %v358 = vmul.f32 %v354, %v354
  %v359 = vadd.f32 %v355, %v356
  %v360 = vadd.f32 %v359, %v357
  %v361 = vadd.f32 %v360, %v358
  %362 = vadd.xlane.f32.xlu0 %v361
  %v363 = vpop.xlane.xlu0 %362
  %v364 = vmul.f32 %v363, %v195
  %v365 = vadd.f32 %v364, 1e-05
  %v366 = vrsqrt.pop %v365
  %v367 = vmul.f32 %v189, %v366
  %v368 = vmul.f32 %v350, %v367
  %370 = vrot.lane.b32.xlu0 %v368, 1
  %v371 = vpop.permute.xlu0 %370
  %v373 = vsub.f32 %v189, %v371
  %375 = vset.pattern.permute.xlu0 0
  %376 = vperm.xlu0 %375, %v367
  %v377 = vpop.permute.xlu0 %376
  %v379 = vmul.f32 %v298, %v377
  %v380 = vmul.f32 %v300, %v377
  %v381 = vmul.f32 %v339, %v377
  %v382 = vmul.f32 %v341, %v377
  %384 = vset.pattern.permute.xlu0 1
  %385 = vperm.xlu0 %384, %v373
  %v386 = vpop.permute.xlu0 %385
  %v388 = vadd.f32 %v379, %v386
  %v389 = vadd.f32 %v380, %v386
  %v390 = vadd.f32 %v381, %v386
  %v391 = vadd.f32 %v382, %v386
  %v392 = vmax.f32 %v388, 0.0
  %v393 = vmax.f32 %v389, 0.0
  %v394 = vmax.f32 %v390, 0.0
  %v395 = vmax.f32 %v391, 0.0
  %v396 = vpack.c.bf16 %v392, %v392
  %v397 = vpack.c.bf16 %v393, %v393
  %v398 = vpack.c.bf16 %v394, %v394
  %v399 = vpack.c.bf16 %v395, %v395
  %v404 = vunpack.c.l.b16 %v396
  %v405 = vunpack.c.l.b16 %v397
  %v406 = vunpack.c.l.b16 %v398
  %v407 = vunpack.c.l.b16 %v399
  %v408 = vpack.c.b16 %v405, %v404
  %v409 = vpack.c.b16 %v407, %v406
  %412 = vst [vmem:[%s6] sm:$0xff] %v408
  %413 = vst [vmem:[%s6 + $0x8] sm:$0xff] %v409
  // Predicated region
  $region22: #{model_forward.3} parent=0 // pred_check
    _
  $region23: #{model_forward.3} parent=0 // pred_check_branch
    %415 = sbr.rel (0) target = $region25
  $region24: #{model_forward.3} parent=0 // pred_region
    _
  $region25: #{model_forward.3} parent=0 // pred_fallthru
    _
  // Predicated region
  $region26: #{model_forward.3} parent=0 // pred_check
    _
  $region27: #{model_forward.3} parent=0 // pred_check_branch
    %417 = sbr.rel (0) target = $region29
  $region28: #{model_forward.3} parent=0 // pred_region
    _
  $region29: #{model_forward.3} parent=0 // pred_fallthru
    _
  // Predicated region
  $region30: #{model_forward.3} parent=0 // pred_check
    _
  $region31: #{model_forward.3} parent=0 // pred_check_branch
    %419 = sbr.rel (0) target = $region33
  $region32: #{model_forward.3} parent=0 // pred_region
    _
  $region33: #{model_forward.3} parent=0 // pred_fallthru
    _
  // Predicated region
  $region34: #{model_forward.3} parent=0 // pred_check
    _
  $region35: #{model_forward.3} parent=0 // pred_check_branch
    %421 = sbr.rel (0) target = $region37
  $region36: #{model_forward.3} parent=0 // pred_region
    _
  $region37: #{model_forward.3} parent=0 // pred_fallthru
    _

// kernel: model_forward.4
$region0: #{model_forward.4}
  #allocation0 [shape = 'u32[]', space=smem, size = 0x4, offset = 0x4, fixed_abs, tag = 'smem constant byte address 0x4 - core index']
  #allocation1 [shape = 'u32[144,128]{1,0:T(1,128)}', space=vmem, size = 0x12000, scoped, tag = 'internal scratch']
  %s0 = inlined_call_operand.vmem [shape: bf16[72,512], index: 0, kind: input, shape index: {}]
  %s1 = inlined_call_operand.vmem [shape: bf16[8,72], index: 1, kind: input, shape index: {}]
  %s2 = inlined_call_operand.vmem [shape: f32[8,2], index: 2, kind: input, shape index: {}]
  %s3 = inlined_call_operand.vmem [shape: bf16[8,8], index: 3, kind: input, shape index: {}]
  %s4 = inlined_call_operand.vmem [shape: f32[8,512], index: 4, kind: input, shape index: {}]
  %s5 = inlined_call_operand.vmem [shape: f32[8,2], index: 5, kind: input, shape index: {}]
  %s6 = inlined_call_operand.vmem [shape: bf16[16,8], index: 6, kind: input, shape index: {}]
  %s7 = inlined_call_operand.vmem [shape: f32[16,2], index: 7, kind: input, shape index: {}]
  %s8 = inlined_call_operand.vmem [shape: f32[8,512], index: 8, kind: output, shape index: {0}]
  %s9 = inlined_call_operand.vmem [shape: bf16[16,512], index: 9, kind: output, shape index: {1}]
  %10 = xla_tuple %s8, %s9
  %s11 = sld [smem:[#allocation0]]
  $region50: #{model_forward.4} parent=0
    _
  %s13 = ssub.s32 1, %s11
  %s14 = scalar_select 0, %s13, %s11
  // Predicated region
  $region2: #{model_forward.4} parent=0 // pred_check
    _
  $region3: #{model_forward.4} parent=0 // pred_check_branch
    %16 = sbr.rel (0) target = $region5
  $region4: #{model_forward.4} parent=0 // pred_region
    _
  $region5: #{model_forward.4} parent=0 // pred_fallthru
    _
  // Predicated region
  $region6: #{model_forward.4} parent=0 // pred_check
    _
  $region7: #{model_forward.4} parent=0 // pred_check_branch
    %18 = sbr.rel (0) target = $region9
  $region8: #{model_forward.4} parent=0 // pred_region
    _
  $region9: #{model_forward.4} parent=0 // pred_fallthru
    _
  // Predicated region
  $region10: #{model_forward.4} parent=0 // pred_check
    _
  $region11: #{model_forward.4} parent=0 // pred_check_branch
    %20 = sbr.rel (0) target = $region13
  $region12: #{model_forward.4} parent=0 // pred_region
    _
  $region13: #{model_forward.4} parent=0 // pred_fallthru
    _
  // Predicated region
  $region14: #{model_forward.4} parent=0 // pred_check
    _
  $region15: #{model_forward.4} parent=0 // pred_check_branch
    %22 = sbr.rel (0) target = $region17
  $region16: #{model_forward.4} parent=0 // pred_region
    _
  $region17: #{model_forward.4} parent=0 // pred_fallthru
    _
  // Predicated region
  $region18: #{model_forward.4} parent=0 // pred_check
    _
  $region19: #{model_forward.4} parent=0 // pred_check_branch
    %24 = sbr.rel (0) target = $region21
  $region20: #{model_forward.4} parent=0 // pred_region
    _
  $region21: #{model_forward.4} parent=0 // pred_fallthru
    _
  // Predicated region
  $region22: #{model_forward.4} parent=0 // pred_check
    _
  $region23: #{model_forward.4} parent=0 // pred_check_branch
    %26 = sbr.rel (0) target = $region25
  $region24: #{model_forward.4} parent=0 // pred_region
    _
  $region25: #{model_forward.4} parent=0 // pred_fallthru
    _
  // Predicated region
  $region26: #{model_forward.4} parent=0 // pred_check
    _
  $region27: #{model_forward.4} parent=0 // pred_check_branch
    %28 = sbr.rel (0) target = $region29
  $region28: #{model_forward.4} parent=0 // pred_region
    _
  $region29: #{model_forward.4} parent=0 // pred_fallthru
    _
  // Predicated region
  $region30: #{model_forward.4} parent=0 // pred_check
    _
  $region31: #{model_forward.4} parent=0 // pred_check_branch
    %30 = sbr.rel (0) target = $region33
  $region32: #{model_forward.4} parent=0 // pred_region
    _
  $region33: #{model_forward.4} parent=0 // pred_fallthru
    _
  %v32 = vld [vmem:[%s0] sm:$0xff]
  %v33 = vld [vmem:[%s0 + $0x8] sm:$0xff]
  %v34 = vld [vmem:[%s0 + $0x10] sm:$0xff]
  %v35 = vld [vmem:[%s0 + $0x18] sm:$0xff]
  %v36 = vld [vmem:[%s0 + $0x20] sm:$0xff]
  %v37 = vld [vmem:[%s0 + $0x28] sm:$0xff]
  %v38 = vld [vmem:[%s0 + $0x30] sm:$0xff]
  %v39 = vld [vmem:[%s0 + $0x38] sm:$0xff]
  %v40 = vld [vmem:[%s0 + $0x40] sm:$0xff]
  %v41 = vld [vmem:[%s0 + $0x48] sm:$0xff]
  %v42 = vld [vmem:[%s0 + $0x50] sm:$0xff]
  %v43 = vld [vmem:[%s0 + $0x58] sm:$0xff]
  %v44 = vld [vmem:[%s0 + $0x60] sm:$0xff]
  %v45 = vld [vmem:[%s0 + $0x68] sm:$0xff]
  %v46 = vld [vmem:[%s0 + $0x70] sm:$0xff]
  %v47 = vld [vmem:[%s0 + $0x78] sm:$0xff]
  %v48 = vld [vmem:[%s0 + $0x80] sm:$0xff]
  %v49 = vld [vmem:[%s0 + $0x88] sm:$0xff]
  %v50 = vld [vmem:[%s1] sm:$0xf]
  %v51 = vld [vmem:[%s2] sm:$0xff]
  %v52 = vld [vmem:[%s3] sm:$0xf]
  %v53 = vld [vmem:[%s4] sm:$0xff]
  %v54 = vld [vmem:[%s4 + $0x8] sm:$0xff]
  %v55 = vld [vmem:[%s4 + $0x10] sm:$0xff]
  %v56 = vld [vmem:[%s4 + $0x18] sm:$0xff]
  %v75 = vunpack.c.l.b16 %v32
  %v76 = vunpack.c.h.b16 %v32
  %v77 = vunpack.c.l.b16 %v33
  %v78 = vunpack.c.h.b16 %v33
  %v79 = vunpack.c.l.b16 %v34
  %v80 = vunpack.c.h.b16 %v34
  %v81 = vunpack.c.l.b16 %v35
  %v82 = vunpack.c.h.b16 %v35
  %v83 = vunpack.c.l.b16 %v36
  %v84 = vunpack.c.h.b16 %v36
  %v85 = vunpack.c.l.b16 %v37
  %v86 = vunpack.c.h.b16 %v37
  %v87 = vunpack.c.l.b16 %v38
  %v88 = vunpack.c.h.b16 %v38
  %v89 = vunpack.c.l.b16 %v39
  %v90 = vunpack.c.h.b16 %v39
  %v91 = vunpack.c.l.b16 %v40
  %v92 = vunpack.c.h.b16 %v40
  %v93 = vunpack.c.l.b16 %v41
  %v94 = vunpack.c.h.b16 %v41
  %v95 = vunpack.c.l.b16 %v42
  %v96 = vunpack.c.h.b16 %v42
  %v97 = vunpack.c.l.b16 %v43
  %v98 = vunpack.c.h.b16 %v43
  %v99 = vunpack.c.l.b16 %v44
  %v100 = vunpack.c.h.b16 %v44
  %v101 = vunpack.c.l.b16 %v45
  %v102 = vunpack.c.h.b16 %v45
  %v103 = vunpack.c.l.b16 %v46
  %v104 = vunpack.c.h.b16 %v46
  %v105 = vunpack.c.l.b16 %v47
  %v106 = vunpack.c.h.b16 %v47
  %v107 = vunpack.c.l.b16 %v48
  %v108 = vunpack.c.h.b16 %v48
  %v109 = vunpack.c.l.b16 %v49
  %v110 = vunpack.c.h.b16 %v49
  %v111 = vpack.c.b16 %v79, %v75
  %v112 = vpack.c.b16 %v80, %v76
  %v113 = vpack.c.b16 %v81, %v77
  %v114 = vpack.c.b16 %v82, %v78
  %v115 = vpack.c.b16 %v87, %v83
  %v116 = vpack.c.b16 %v88, %v84
  %v117 = vpack.c.b16 %v89, %v85
  %v118 = vpack.c.b16 %v90, %v86
  %v119 = vpack.c.b16 %v95, %v91
  %v120 = vpack.c.b16 %v96, %v92
  %v121 = vpack.c.b16 %v97, %v93
  %v122 = vpack.c.b16 %v98, %v94
  %v123 = vpack.c.b16 %v103, %v99
  %v124 = vpack.c.b16 %v104, %v100
  %v125 = vpack.c.b16 %v105, %v101
  %v126 = vpack.c.b16 %v106, %v102
  %v127 = vpack.c.b16 %v107, %v107
  %v128 = vpack.c.b16 %v108, %v108
  %v129 = vpack.c.b16 %v109, %v109
  %v130 = vpack.c.b16 %v110, %v110
  %vm147 = vcmask 588800
  %v149 = vsel %vm147, %v50, 0
  %vm151 = vcmask 1043456
  %v153 = vsel %vm151, %v127, 0
  %v156 = vsel %vm151, %v128, 0
  %v159 = vsel %vm151, %v129, 0
  %v162 = vsel %vm151, %v130, 0
  %164 = vmatprep.subr.bf16.mxu0 0
  %165 = vmatpush1.bf16.msra.mxu0 0
  %166 = vmatprep.subr.bf16.mxu0 0
  %167 = vmatpush1.bf16.msra.mxu0 0
  %168 = vmatprep.subr.bf16.mxu0 0
  %169 = vmatpush1.bf16.msra.mxu0 0
  %170 = vmatprep.subr.bf16.mxu0 %v156
  %171 = vmatpush1.bf16.msra.mxu0 %v153
  %172 = vmatprep.subr.bf16.mxu0 %v124
  %173 = vmatpush1.bf16.msra.mxu0 %v123
  %174 = vmatprep.subr.bf16.mxu0 %v120
  %175 = vmatpush1.bf16.msra.mxu0 %v119
  %176 = vmatprep.subr.bf16.mxu0 %v116
  %177 = vmatpush1.bf16.msra.mxu0 %v115
  %178 = vmatprep.subr.bf16.mxu0 %v112
  %179 = vmatpush1.bf16.msra.mxu0 %v111
  %180 = vmatprep.subr.bf16.mxu0 0
  %181 = vmatpush2.bf16.msra.mxu0 0
  %182 = vmatprep.subr.bf16.mxu0 0
  %183 = vmatpush2.bf16.msra.mxu0 0
  %184 = vmatprep.subr.bf16.mxu0 0
  %185 = vmatpush2.bf16.msra.mxu0 0
  %186 = vmatprep.subr.bf16.mxu0 0
  %187 = vmatpush2.bf16.msra.mxu0 0
  %188 = vmatprep.subr.bf16.mxu0 0
  %189 = vmatpush2.bf16.msra.mxu0 0
  %190 = vmatprep.subr.bf16.mxu0 0
  %191 = vmatpush2.bf16.msra.mxu0 0
  %192 = vmatprep.subr.bf16.mxu0 0
  %193 = vmatpush2.bf16.msra.mxu0 0
  %194 = vmatprep.subr.bf16.mxu0 0
  %195 = vmatpush2.bf16.msra.mxu0 0
  %196 = vmatprep.mubr.bf16.mxu0 0
  %197 = vmatmul.mubr.bf16.gmra.mxu0 %v149
  %v198 = vpop.f32.mrf.mxu0
  %v199 = vadd.f32 0.0, %v198
  %v200 = vpop.f32.mrf.mxu0
  %v201 = vadd.f32 0.0, %v200
  %v202 = vpop.f32.mrf.mxu0
  %v203 = vpop.f32.mrf.mxu0
  %204 = vdwg.mxu0
  %205 = vmatprep.subr.bf16.mxu0 0
  %206 = vmatpush1.bf16.msra.mxu0 0
  %207 = vmatprep.subr.bf16.mxu0 0
  %208 = vmatpush1.bf16.msra.mxu0 0
  %209 = vmatprep.subr.bf16.mxu0 0
  %210 = vmatpush1.bf16.msra.mxu0 0
  %211 = vmatprep.subr.bf16.mxu0 %v162
  %212 = vmatpush1.bf16.msra.mxu0 %v159
  %213 = vmatprep.subr.bf16.mxu0 %v126
  %214 = vmatpush1.bf16.msra.mxu0 %v125
  %215 = vmatprep.subr.bf16.mxu0 %v122
  %216 = vmatpush1.bf16.msra.mxu0 %v121
  %217 = vmatprep.subr.bf16.mxu0 %v118
  %218 = vmatpush1.bf16.msra.mxu0 %v117
  %219 = vmatprep.subr.bf16.mxu0 %v114
  %220 = vmatpush1.bf16.msra.mxu0 %v113
  %221 = vmatprep.subr.bf16.mxu0 0
  %222 = vmatpush2.bf16.msra.mxu0 0
  %223 = vmatprep.subr.bf16.mxu0 0
  %224 = vmatpush2.bf16.msra.mxu0 0
  %225 = vmatprep.subr.bf16.mxu0 0
  %226 = vmatpush2.bf16.msra.mxu0 0
  %227 = vmatprep.subr.bf16.mxu0 0
  %228 = vmatpush2.bf16.msra.mxu0 0
  %229 = vmatprep.subr.bf16.mxu0 0
  %230 = vmatpush2.bf16.msra.mxu0 0
  %231 = vmatprep.subr.bf16.mxu0 0
  %232 = vmatpush2.bf16.msra.mxu0 0
  %233 = vmatprep.subr.bf16.mxu0 0
  %234 = vmatpush2.bf16.msra.mxu0 0
  %235 = vmatprep.subr.bf16.mxu0 0
  %236 = vmatpush2.bf16.msra.mxu0 0
  %237 = vmatprep.mubr.bf16.mxu0 0
  %238 = vmatmul.mubr.bf16.gmra.mxu0 %v149
  %v239 = vpop.f32.mrf.mxu0
  %v240 = vadd.f32 0.0, %v239
  %v241 = vpop.f32.mrf.mxu0
  %v242 = vadd.f32 0.0, %v241
  %v243 = vpop.f32.mrf.mxu0
  %v244 = vpop.f32.mrf.mxu0
  %245 = vdwg.mxu0
  %v246 = vadd.f32 %v199, %v201
  %v247 = vadd.f32 %v246, %v240
  %v248 = vadd.f32 %v247, %v242
  %249 = vadd.xlane.f32.xlu0 %v248
  %v250 = vpop.xlane.xlu0 %249
  %v251 = vrcp.pop 512.0
  %v252 = vmul.f32 %v250, %v251
  %v253 = vsub.f32 %v199, %v252
  %v254 = vsub.f32 %v201, %v252
  %v255 = vsub.f32 %v240, %v252
  %v256 = vsub.f32 %v242, %v252
  %v257 = vmul.f32 %v253, %v253
  %v258 = vmul.f32 %v254, %v254
  %v259 = vmul.f32 %v255, %v255
  %v260 = vmul.f32 %v256, %v256
  %v261 = vadd.f32 %v257, %v258
  %v262 = vadd.f32 %v261, %v259
  %v263 = vadd.f32 %v262, %v260
  %264 = vadd.xlane.f32.xlu0 %v263
  %v265 = vpop.xlane.xlu0 %264
  %v266 = vmul.f32 %v265, %v251
  %v267 = vadd.f32 %v266, 1e-05
  %v268 = vrsqrt.pop %v267
  %v269 = vmul.f32 %v51, %v268
  %v270 = vmul.f32 %v252, %v269
  %272 = vrot.lane.b32.xlu0 %v270, 1
  %v273 = vpop.permute.xlu0 %272
  %v275 = vsub.f32 %v51, %v273
  %277 = vset.pattern.permute.xlu0 0
  %278 = vperm.xlu0 %277, %v269
  %v279 = vpop.permute.xlu0 %278
  %v281 = vmul.f32 %v199, %v279
  %v282 = vmul.f32 %v201, %v279
  %v283 = vmul.f32 %v240, %v279
  %v284 = vmul.f32 %v242, %v279
  %286 = vset.pattern.permute.xlu0 1
  %287 = vperm.xlu0 %286, %v275
  %v288 = vpop.permute.xlu0 %287
  %v290 = vadd.f32 %v281, %v288
  %v291 = vadd.f32 %v282, %v288
  %v292 = vadd.f32 %v283, %v288
  %v293 = vadd.f32 %v284, %v288
  %v294 = vmax.f32 %v290, 0.0
  %v295 = vmax.f32 %v291, 0.0
  %v296 = vmax.f32 %v292, 0.0
  %v297 = vmax.f32 %v293, 0.0
  %v298 = vpack.c.bf16 %v294, %v294
  %v299 = vpack.c.bf16 %v295, %v295
  %v300 = vpack.c.bf16 %v296, %v296
  %v301 = vpack.c.bf16 %v297, %v297
  %vm302 = vcmask 64512
  %v304 = vsel %vm302, %v52, 0
  %v307 = vsel %vm151, %v298, 0
  %v310 = vsel %vm151, %v299, 0
  %v313 = vsel %vm151, %v300, 0
  %v316 = vsel %vm151, %v301, 0
  %318 = vmatprep.subr.bf16.mxu0 0
  %319 = vmatpush1.bf16.msra.mxu0 0
  %320 = vmatprep.subr.bf16.mxu0 0
  %321 = vmatpush1.bf16.msra.mxu0 0
  %322 = vmatprep.subr.bf16.mxu0 0
  %323 = vmatpush1.bf16.msra.mxu0 0
  %324 = vmatprep.subr.bf16.mxu0 0
  %325 = vmatpush1.bf16.msra.mxu0 0
  %326 = vmatprep.subr.bf16.mxu0 0
  %327 = vmatpush1.bf16.msra.mxu0 0
  %328 = vmatprep.subr.bf16.mxu0 0
  %329 = vmatpush1.bf16.msra.mxu0 0
  %330 = vmatprep.subr.bf16.mxu0 0
  %331 = vmatpush1.bf16.msra.mxu0 0
  %332 = vmatprep.subr.bf16.mxu0 %v310
  %333 = vmatpush1.bf16.msra.mxu0 %v307
  %334 = vmatprep.subr.bf16.mxu0 0
  %335 = vmatpush2.bf16.msra.mxu0 0
  %336 = vmatprep.subr.bf16.mxu0 0
  %337 = vmatpush2.bf16.msra.mxu0 0
  %338 = vmatprep.subr.bf16.mxu0 0
  %339 = vmatpush2.bf16.msra.mxu0 0
  %340 = vmatprep.subr.bf16.mxu0 0
  %341 = vmatpush2.bf16.msra.mxu0 0
  %342 = vmatprep.subr.bf16.mxu0 0
  %343 = vmatpush2.bf16.msra.mxu0 0
  %344 = vmatprep.subr.bf16.mxu0 0
  %345 = vmatpush2.bf16.msra.mxu0 0
  %346 = vmatprep.subr.bf16.mxu0 0
  %347 = vmatpush2.bf16.msra.mxu0 0
  %348 = vmatprep.subr.bf16.mxu0 0
  %349 = vmatpush2.bf16.msra.mxu0 0
  %350 = vmatprep.mubr.bf16.mxu0 0
  %351 = vmatmul.mubr.bf16.gmra.mxu0 %v304
  %v352 = vpop.f32.mrf.mxu0
  %v353 = vadd.f32 %v53, %v352
  %v354 = vpop.f32.mrf.mxu0
  %v355 = vadd.f32 %v54, %v354
  %v356 = vpop.f32.mrf.mxu0
  %v357 = vpop.f32.mrf.mxu0
  %358 = vdwg.mxu0
  %359 = vmatprep.subr.bf16.mxu0 0
  %360 = vmatpush1.bf16.msra.mxu0 0
  %361 = vmatprep.subr.bf16.mxu0 0
  %362 = vmatpush1.bf16.msra.mxu0 0
  %363 = vmatprep.subr.bf16.mxu0 0
  %364 = vmatpush1.bf16.msra.mxu0 0
  %365 = vmatprep.subr.bf16.mxu0 0
  %366 = vmatpush1.bf16.msra.mxu0 0
  %367 = vmatprep.subr.bf16.mxu0 0
  %368 = vmatpush1.bf16.msra.mxu0 0
  %369 = vmatprep.subr.bf16.mxu0 0
  %370 = vmatpush1.bf16.msra.mxu0 0
  %371 = vmatprep.subr.bf16.mxu0 0
  %372 = vmatpush1.bf16.msra.mxu0 0
  %373 = vmatprep.subr.bf16.mxu0 %v316
  %374 = vmatpush1.bf16.msra.mxu0 %v313
  %375 = vmatprep.subr.bf16.mxu0 0
  %376 = vmatpush2.bf16.msra.mxu0 0
  %377 = vmatprep.subr.bf16.mxu0 0
  %378 = vmatpush2.bf16.msra.mxu0 0
  %379 = vmatprep.subr.bf16.mxu0 0
  %380 = vmatpush2.bf16.msra.mxu0 0
  %381 = vmatprep.subr.bf16.mxu0 0
  %382 = vmatpush2.bf16.msra.mxu0 0
  %383 = vmatprep.subr.bf16.mxu0 0
  %384 = vmatpush2.bf16.msra.mxu0 0
  %385 = vmatprep.subr.bf16.mxu0 0
  %386 = vmatpush2.bf16.msra.mxu0 0
  %387 = vmatprep.subr.bf16.mxu0 0
  %388 = vmatpush2.bf16.msra.mxu0 0
  %389 = vmatprep.subr.bf16.mxu0 0
  %390 = vmatpush2.bf16.msra.mxu0 0
  %391 = vmatprep.mubr.bf16.mxu0 0
  %392 = vmatmul.mubr.bf16.gmra.mxu0 %v304
  %v393 = vpop.f32.mrf.mxu0
  %v394 = vadd.f32 %v55, %v393
  %v395 = vpop.f32.mrf.mxu0
  %v396 = vadd.f32 %v56, %v395
  %v397 = vpop.f32.mrf.mxu0
  %v398 = vpop.f32.mrf.mxu0
  %399 = vdwg.mxu0
  %400 = vst [vmem:[%s8] sm:$0xff] %v353
  %401 = vst [vmem:[%s8 + $0x8] sm:$0xff] %v355
  %402 = vst [vmem:[%s8 + $0x10] sm:$0xff] %v394
  %403 = vst [vmem:[%s8 + $0x18] sm:$0xff] %v396
  %v404 = vld [vmem:[%s5] sm:$0xff]
  %v405 = vld [vmem:[%s6] sm:$0xf]
  %v406 = vld [vmem:[%s6 + $0x4] sm:$0xf]
  %v407 = vld [vmem:[%s7] sm:$0xff]
  %v408 = vld [vmem:[%s7 + $0x8] sm:$0xff]
  %v409 = vadd.f32 %v353, %v355
  %v410 = vadd.f32 %v409, %v394
  %v411 = vadd.f32 %v410, %v396
  %412 = vadd.xlane.f32.xlu0 %v411
  %v413 = vpop.xlane.xlu0 %412
  %v414 = vmul.f32 %v413, %v251
  %v415 = vsub.f32 %v353, %v414
  %v416 = vsub.f32 %v355, %v414
  %v417 = vsub.f32 %v394, %v414
  %v418 = vsub.f32 %v396, %v414
  %v419 = vmul.f32 %v415, %v415
  %v420 = vmul.f32 %v416, %v416
  %v421 = vmul.f32 %v417, %v417
  %v422 = vmul.f32 %v418, %v418
  %v423 = vadd.f32 %v419, %v420
  %v424 = vadd.f32 %v423, %v421
  %v425 = vadd.f32 %v424, %v422
  %426 = vadd.xlane.f32.xlu0 %v425
  %v427 = vpop.xlane.xlu0 %426
  %v428 = vmul.f32 %v427, %v251
  %v429 = vadd.f32 %v428, 1e-05
  %v430 = vrsqrt.pop %v429
  %v431 = vmul.f32 %v404, %v430
  %v432 = vmul.f32 %v414, %v431
  %434 = vrot.lane.b32.xlu0 %v432, 1
  %v435 = vpop.permute.xlu0 %434
  %v437 = vsub.f32 %v404, %v435
  %439 = vset.pattern.permute.xlu0 0
  %440 = vperm.xlu0 %439, %v431
  %v441 = vpop.permute.xlu0 %440
  %v443 = vmul.f32 %v353, %v441
  %v444 = vmul.f32 %v355, %v441
  %v445 = vmul.f32 %v394, %v441
  %v446 = vmul.f32 %v396, %v441
  %448 = vset.pattern.permute.xlu0 1
  %449 = vperm.xlu0 %448, %v437
  %v450 = vpop.permute.xlu0 %449
  %v452 = vadd.f32 %v443, %v450
  %v453 = vadd.f32 %v444, %v450
  %v454 = vadd.f32 %v445, %v450
  %v455 = vadd.f32 %v446, %v450
  %v456 = vmax.f32 %v452, 0.0
  %v457 = vmax.f32 %v453, 0.0
  %v458 = vmax.f32 %v454, 0.0
  %v459 = vmax.f32 %v455, 0.0
  %v460 = vpack.c.bf16 %v456, %v456
  %v461 = vpack.c.bf16 %v457, %v457
  %v462 = vpack.c.bf16 %v458, %v458
  %v463 = vpack.c.bf16 %v459, %v459
  %v466 = vunpack.c.l.b16 %v405
  %v467 = vunpack.c.l.b16 %v406
  %v468 = vpack.c.b16 %v467, %v466
  %v470 = vsel %vm302, %v468, 0
  %v473 = vsel %vm151, %v460, 0
  %v476 = vsel %vm151, %v461, 0
  %v479 = vsel %vm151, %v462, 0
  %v482 = vsel %vm151, %v463, 0
  %484 = vmatprep.subr.bf16.mxu0 0
  %485 = vmatpush1.bf16.msra.mxu0 0
  %486 = vmatprep.subr.bf16.mxu0 0
  %487 = vmatpush1.bf16.msra.mxu0 0
  %488 = vmatprep.subr.bf16.mxu0 0
  %489 = vmatpush1.bf16.msra.mxu0 0
  %490 = vmatprep.subr.bf16.mxu0 0
  %491 = vmatpush1.bf16.msra.mxu0 0
  %492 = vmatprep.subr.bf16.mxu0 0
  %493 = vmatpush1.bf16.msra.mxu0 0
  %494 = vmatprep.subr.bf16.mxu0 0
  %495 = vmatpush1.bf16.msra.mxu0 0
  %496 = vmatprep.subr.bf16.mxu0 0
  %497 = vmatpush1.bf16.msra.mxu0 0
  %498 = vmatprep.subr.bf16.mxu0 %v476
  %499 = vmatpush1.bf16.msra.mxu0 %v473
  %500 = vmatprep.subr.bf16.mxu0 0
  %501 = vmatpush2.bf16.msra.mxu0 0
  %502 = vmatprep.subr.bf16.mxu0 0
  %503 = vmatpush2.bf16.msra.mxu0 0
  %504 = vmatprep.subr.bf16.mxu0 0
  %505 = vmatpush2.bf16.msra.mxu0 0
  %506 = vmatprep.subr.bf16.mxu0 0
  %507 = vmatpush2.bf16.msra.mxu0 0
  %508 = vmatprep.subr.bf16.mxu0 0
  %509 = vmatpush2.bf16.msra.mxu0 0
  %510 = vmatprep.subr.bf16.mxu0 0
  %511 = vmatpush2.bf16.msra.mxu0 0
  %512 = vmatprep.subr.bf16.mxu0 0
  %513 = vmatpush2.bf16.msra.mxu0 0
  %514 = vmatprep.subr.bf16.mxu0 0
  %515 = vmatpush2.bf16.msra.mxu0 0
  %516 = vmatprep.mubr.bf16.mxu0 0
  %517 = vmatmul.mubr.bf16.gmra.mxu0 %v470
  %v518 = vpop.f32.mrf.mxu0
  %v519 = vadd.f32 0.0, %v518
  %v520 = vpop.f32.mrf.mxu0
  %v521 = vadd.f32 0.0, %v520
  %v522 = vpop.f32.mrf.mxu0
  %v523 = vadd.f32 0.0, %v522
  %v524 = vpop.f32.mrf.mxu0
  %v525 = vadd.f32 0.0, %v524
  %526 = vdwg.mxu0
  %527 = vmatprep.subr.bf16.mxu0 0
  %528 = vmatpush1.bf16.msra.mxu0 0
  %529 = vmatprep.subr.bf16.mxu0 0
  %530 = vmatpush1.bf16.msra.mxu0 0
  %531 = vmatprep.subr.bf16.mxu0 0
  %532 = vmatpush1.bf16.msra.mxu0 0
  %533 = vmatprep.subr.bf16.mxu0 0
  %534 = vmatpush1.bf16.msra.mxu0 0
  %535 = vmatprep.subr.bf16.mxu0 0
  %536 = vmatpush1.bf16.msra.mxu0 0
  %537 = vmatprep.subr.bf16.mxu0 0
  %538 = vmatpush1.bf16.msra.mxu0 0
  %539 = vmatprep.subr.bf16.mxu0 0
  %540 = vmatpush1.bf16.msra.mxu0 0
  %541 = vmatprep.subr.bf16.mxu0 %v482
  %542 = vmatpush1.bf16.msra.mxu0 %v479
  %543 = vmatprep.subr.bf16.mxu0 0
  %544 = vmatpush2.bf16.msra.mxu0 0
  %545 = vmatprep.subr.bf16.mxu0 0
  %546 = vmatpush2.bf16.msra.mxu0 0
  %547 = vmatprep.subr.bf16.mxu0 0
  %548 = vmatpush2.bf16.msra.mxu0 0
  %549 = vmatprep.subr.bf16.mxu0 0
  %550 = vmatpush2.bf16.msra.mxu0 0
  %551 = vmatprep.subr.bf16.mxu0 0
  %552 = vmatpush2.bf16.msra.mxu0 0
  %553 = vmatprep.subr.bf16.mxu0 0
  %554 = vmatpush2.bf16.msra.mxu0 0
  %555 = vmatprep.subr.bf16.mxu0 0
  %556 = vmatpush2.bf16.msra.mxu0 0
  %557 = vmatprep.subr.bf16.mxu0 0
  %558 = vmatpush2.bf16.msra.mxu0 0
  %559 = vmatprep.mubr.bf16.mxu0 0
  %560 = vmatmul.mubr.bf16.gmra.mxu0 %v470
  %v561 = vpop.f32.mrf.mxu0
  %v562 = vadd.f32 0.0, %v561
  %v563 = vpop.f32.mrf.mxu0
  %v564 = vadd.f32 0.0, %v563
  %v565 = vpop.f32.mrf.mxu0
  %v566 = vadd.f32 0.0, %v565
  %v567 = vpop.f32.mrf.mxu0
  %v568 = vadd.f32 0.0, %v567
  %569 = vdwg.mxu0
  %v570 = vadd.f32 %v519, %v521
  %v571 = vadd.f32 %v570, %v562
  %v572 = vadd.f32 %v571, %v564
  %573 = vadd.xlane.f32.xlu0 %v572
  %v574 = vpop.xlane.xlu0 %573
  %v575 = vadd.f32 %v523, %v525
  %v576 = vadd.f32 %v575, %v566
  %v577 = vadd.f32 %v576, %v568
  %578 = vadd.xlane.f32.xlu0 %v577
  %v579 = vpop.xlane.xlu0 %578
  %v580 = vmul.f32 %v574, %v251
  %v581 = vmul.f32 %v579, %v251
  %v582 = vsub.f32 %v519, %v580
  %v583 = vsub.f32 %v521, %v580
  %v584 = vsub.f32 %v562, %v580
  %v585 = vsub.f32 %v564, %v580
  %v586 = vsub.f32 %v523, %v581
  %v587 = vsub.f32 %v525, %v581
  %v588 = vsub.f32 %v566, %v581
  %v589 = vsub.f32 %v568, %v581
  %v590 = vmul.f32 %v582, %v582
  %v591 = vmul.f32 %v583, %v583
  %v592 = vmul.f32 %v584, %v584
  %v593 = vmul.f32 %v585, %v585
  %v594 = vmul.f32 %v586, %v586
  %v595 = vmul.f32 %v587, %v587
  %v596 = vmul.f32 %v588, %v588
  %v597 = vmul.f32 %v589, %v589
  %v598 = vadd.f32 %v590, %v591
  %v599 = vadd.f32 %v598, %v592
  %v600 = vadd.f32 %v599, %v593
  %601 = vadd.xlane.f32.xlu0 %v600
  %v602 = vpop.xlane.xlu0 %601
  %v603 = vadd.f32 %v594, %v595
  %v604 = vadd.f32 %v603, %v596
  %v605 = vadd.f32 %v604, %v597
  %606 = vadd.xlane.f32.xlu0 %v605
  %v607 = vpop.xlane.xlu0 %606
  %v608 = vmul.f32 %v602, %v251
  %v609 = vmul.f32 %v607, %v251
  %v610 = vadd.f32 %v608, 1e-05
  %v611 = vadd.f32 %v609, 1e-05
  %v612 = vrsqrt.pop %v610
  %v613 = vrsqrt.pop %v611
  %v614 = vmul.f32 %v407, %v612
  %v615 = vmul.f32 %v408, %v613
  %v616 = vmul.f32 %v580, %v614
  %v617 = vmul.f32 %v581, %v615
  %620 = vrot.lane.b32.xlu0 %v616, 1
  %v621 = vpop.permute.xlu0 %620
  %622 = vrot.lane.b32.xlu0 %v617, 1
  %v623 = vpop.permute.xlu0 %622
  %v626 = vsub.f32 %v407, %v621
  %v627 = vsub.f32 %v408, %v623
  %629 = vset.pattern.permute.xlu0 0
  %630 = vperm.xlu0 %629, %v614
  %v631 = vpop.permute.xlu0 %630
  %634 = vset.pattern.permute.xlu0 0
  %635 = vperm.xlu0 %634, %v615
  %v636 = vpop.permute.xlu0 %635
  %v638 = vmul.f32 %v519, %v631
  %v639 = vmul.f32 %v521, %v631
  %v640 = vmul.f32 %v562, %v631
  %v641 = vmul.f32 %v564, %v631
  %v642 = vmul.f32 %v523, %v636
  %v643 = vmul.f32 %v525, %v636
  %v644 = vmul.f32 %v566, %v636
  %v645 = vmul.f32 %v568, %v636
  %647 = vset.pattern.permute.xlu0 1
  %648 = vperm.xlu0 %647, %v626
  %v649 = vpop.permute.xlu0 %648
  %652 = vset.pattern.permute.xlu0 1
  %653 = vperm.xlu0 %652, %v627
  %v654 = vpop.permute.xlu0 %653
  %v656 = vadd.f32 %v638, %v649
  %v657 = vadd.f32 %v639, %v649
  %v658 = vadd.f32 %v640, %v649
  %v659 = vadd.f32 %v641, %v649
  %v660 = vadd.f32 %v642, %v654
  %v661 = vadd.f32 %v643, %v654
  %v662 = vadd.f32 %v644, %v654
  %v663 = vadd.f32 %v645, %v654
  %v664 = vmax.f32 %v656, 0.0
  %v665 = vmax.f32 %v657, 0.0
  %v666 = vmax.f32 %v658, 0.0
  %v667 = vmax.f32 %v659, 0.0
  %v668 = vmax.f32 %v660, 0.0
  %v669 = vmax.f32 %v661, 0.0
  %v670 = vmax.f32 %v662, 0.0
  %v671 = vmax.f32 %v663, 0.0
  %v672 = vpack.c.bf16 %v668, %v664
  %v673 = vpack.c.bf16 %v669, %v665
  %v674 = vpack.c.bf16 %v670, %v666
  %v675 = vpack.c.bf16 %v671, %v667
  %v680 = vunpack.c.l.b16 %v672
  %v681 = vunpack.c.l.b16 %v673
  %v682 = vunpack.c.l.b16 %v674
  %v683 = vunpack.c.l.b16 %v675
  %v684 = vunpack.c.h.b16 %v672
  %v685 = vunpack.c.h.b16 %v673
  %v686 = vunpack.c.h.b16 %v674
  %v687 = vunpack.c.h.b16 %v675
  %v688 = vpack.c.b16 %v681, %v680
  %v689 = vpack.c.b16 %v683, %v682
  %v690 = vpack.c.b16 %v685, %v684
  %v691 = vpack.c.b16 %v687, %v686
  %696 = vst [vmem:[%s9] sm:$0xff] %v688
  %697 = vst [vmem:[%s9 + $0x8] sm:$0xff] %v689
  %698 = vst [vmem:[%s9 + $0x10] sm:$0xff] %v690
  %699 = vst [vmem:[%s9 + $0x18] sm:$0xff] %v691
  // Predicated region
  $region34: #{model_forward.4} parent=0 // pred_check
    _
  $region35: #{model_forward.4} parent=0 // pred_check_branch
    %701 = sbr.rel (0) target = $region37
  $region36: #{model_forward.4} parent=0 // pred_region
    _
  $region37: #{model_forward.4} parent=0 // pred_fallthru
    _
  // Predicated region
  $region38: #{model_forward.4} parent=0 // pred_check
    _
  $region39: #{model_forward.4} parent=0 // pred_check_branch
    %703 = sbr.rel (0) target = $region41
  $region40: #{model_forward.4} parent=0 // pred_region
    _
  $region41: #{model_forward.4} parent=0 // pred_fallthru
    _
  // Predicated region
  $region42: #{model_forward.4} parent=0 // pred_check
    _
  $region43: #{model_forward.4} parent=0 // pred_check_branch
    %705 = sbr.rel (0) target = $region45
  $region44: #{model_forward.4} parent=0 // pred_region
    _
  $region45: #{model_forward.4} parent=0 // pred_fallthru
    _
  // Predicated region
  $region46: #{model_forward.4} parent=0 // pred_check
    _
  $region47: #{model_forward.4} parent=0 // pred_check_branch
    %707 = sbr.rel (0) target = $region49
  $region48: #{model_forward.4} parent=0 // pred_region
    _
  $region49: #{model_forward.4} parent=0 // pred_fallthru
    _

// kernel: model_forward.5
$region0: #{model_forward.5}
  #allocation0 [shape = 'u32[]', space=smem, size = 0x4, offset = 0x4, fixed_abs, tag = 'smem constant byte address 0x4 - core index']
  #allocation1 [shape = 'u32[144,128]{1,0:T(1,128)}', space=vmem, size = 0x12000, scoped, tag = 'internal scratch']
  %s0 = inlined_call_operand.vmem [shape: bf16[144,128], index: 0, kind: input, shape index: {}]
  %s1 = inlined_call_operand.vmem [shape: bf16[16,144], index: 1, kind: input, shape index: {}]
  %s2 = inlined_call_operand.vmem [shape: f32[16,2], index: 2, kind: input, shape index: {}]
  %s3 = inlined_call_operand.vmem [shape: bf16[16,16], index: 3, kind: input, shape index: {}]
  %s4 = inlined_call_operand.vmem [shape: f32[8,128], index: 4, kind: input, shape index: {}]
  %s5 = inlined_call_operand.vmem [shape: bf16[16,8], index: 5, kind: input, shape index: {}]
  %s6 = inlined_call_operand.vmem [shape: f32[16,2], index: 6, kind: input, shape index: {}]
  %s7 = inlined_call_operand.vmem [shape: f32[128,2], index: 7, kind: input, shape index: {}]
  %s8 = inlined_call_operand.vmem [shape: f32[10,16], index: 8, kind: input, shape index: {}]
  %s9 = inlined_call_operand.vmem [shape: f32[10,1], index: 9, kind: input, shape index: {}]
  %s10 = inlined_call_operand.vmem [shape: f32[10,2], index: 10, kind: output, shape index: {}]
  %s11 = sld [smem:[#allocation0]]
  $region50: #{model_forward.5} parent=0
    _
  %s13 = ssub.s32 1, %s11
  %s14 = scalar_select 0, %s13, %s11
  // Predicated region
  $region2: #{model_forward.5} parent=0 // pred_check
    _
  $region3: #{model_forward.5} parent=0 // pred_check_branch
    %16 = sbr.rel (0) target = $region5
  $region4: #{model_forward.5} parent=0 // pred_region
    _
  $region5: #{model_forward.5} parent=0 // pred_fallthru
    _
  // Predicated region
  $region6: #{model_forward.5} parent=0 // pred_check
    _
  $region7: #{model_forward.5} parent=0 // pred_check_branch
    %18 = sbr.rel (0) target = $region9
  $region8: #{model_forward.5} parent=0 // pred_region
    _
  $region9: #{model_forward.5} parent=0 // pred_fallthru
    _
  // Predicated region
  $region10: #{model_forward.5} parent=0 // pred_check
    _
  $region11: #{model_forward.5} parent=0 // pred_check_branch
    %20 = sbr.rel (0) target = $region13
  $region12: #{model_forward.5} parent=0 // pred_region
    _
  $region13: #{model_forward.5} parent=0 // pred_fallthru
    _
  // Predicated region
  $region14: #{model_forward.5} parent=0 // pred_check
    _
  $region15: #{model_forward.5} parent=0 // pred_check_branch
    %22 = sbr.rel (0) target = $region17
  $region16: #{model_forward.5} parent=0 // pred_region
    _
  $region17: #{model_forward.5} parent=0 // pred_fallthru
    _
  // Predicated region
  $region18: #{model_forward.5} parent=0 // pred_check
    _
  $region19: #{model_forward.5} parent=0 // pred_check_branch
    %24 = sbr.rel (0) target = $region21
  $region20: #{model_forward.5} parent=0 // pred_region
    _
  $region21: #{model_forward.5} parent=0 // pred_fallthru
    _
  // Predicated region
  $region22: #{model_forward.5} parent=0 // pred_check
    _
  $region23: #{model_forward.5} parent=0 // pred_check_branch
    %26 = sbr.rel (0) target = $region25
  $region24: #{model_forward.5} parent=0 // pred_region
    _
  $region25: #{model_forward.5} parent=0 // pred_fallthru
    _
  // Predicated region
  $region26: #{model_forward.5} parent=0 // pred_check
    _
  $region27: #{model_forward.5} parent=0 // pred_check_branch
    %28 = sbr.rel (0) target = $region29
  $region28: #{model_forward.5} parent=0 // pred_region
    _
  $region29: #{model_forward.5} parent=0 // pred_fallthru
    _
  // Predicated region
  $region30: #{model_forward.5} parent=0 // pred_check
    _
  $region31: #{model_forward.5} parent=0 // pred_check_branch
    %30 = sbr.rel (0) target = $region33
  $region32: #{model_forward.5} parent=0 // pred_region
    _
  $region33: #{model_forward.5} parent=0 // pred_fallthru
    _
  // Predicated region
  $region34: #{model_forward.5} parent=0 // pred_check
    _
  $region35: #{model_forward.5} parent=0 // pred_check_branch
    %32 = sbr.rel (0) target = $region37
  $region36: #{model_forward.5} parent=0 // pred_region
    _
  $region37: #{model_forward.5} parent=0 // pred_fallthru
    _
  // Predicated region
  $region38: #{model_forward.5} parent=0 // pred_check
    _
  $region39: #{model_forward.5} parent=0 // pred_check_branch
    %34 = sbr.rel (0) target = $region41
  $region40: #{model_forward.5} parent=0 // pred_region
    _
  $region41: #{model_forward.5} parent=0 // pred_fallthru
    _
  %v36 = vld [vmem:[%s5] sm:$0xf]
  %v37 = vld [vmem:[%s5 + $0x4] sm:$0xf]
  %v38 = vld [vmem:[%s0] sm:$0xf]
  %v39 = vld [vmem:[%s0 + $0x4] sm:$0xf]
  %v40 = vld [vmem:[%s0 + $0x8] sm:$0xf]
  %v41 = vld [vmem:[%s0 + $0xc] sm:$0xf]
  %v42 = vld [vmem:[%s0 + $0x10] sm:$0xf]
  %v43 = vld [vmem:[%s0 + $0x14] sm:$0xf]
  %v44 = vld [vmem:[%s0 + $0x18] sm:$0xf]
  %v45 = vld [vmem:[%s0 + $0x1c] sm:$0xf]
  %v46 = vld [vmem:[%s0 + $0x20] sm:$0xf]
  %v47 = vld [vmem:[%s0 + $0x24] sm:$0xf]
  %v48 = vld [vmem:[%s0 + $0x28] sm:$0xf]
  %v49 = vld [vmem:[%s0 + $0x2c] sm:$0xf]
  %v50 = vld [vmem:[%s0 + $0x30] sm:$0xf]
  %v51 = vld [vmem:[%s0 + $0x34] sm:$0xf]
  %v52 = vld [vmem:[%s0 + $0x38] sm:$0xf]
  %v53 = vld [vmem:[%s0 + $0x3c] sm:$0xf]
  %v54 = vld [vmem:[%s0 + $0x40] sm:$0xf]
  %v55 = vld [vmem:[%s0 + $0x44] sm:$0xf]
  %v56 = vld [vmem:[%s1] sm:$0xff]
  %v57 = vld [vmem:[%s1 + $0x8] sm:$0xff]
  %v58 = vld [vmem:[%s2] sm:$0xff]
  %v59 = vld [vmem:[%s2 + $0x8] sm:$0xff]
  %v60 = vld [vmem:[%s3] sm:$0xf]
  %v61 = vld [vmem:[%s3 + $0x4] sm:$0xf]
  %v62 = vld [vmem:[%s4] sm:$0xff]
  %v65 = vunpack.c.l.b16 %v56
  %v66 = vunpack.c.h.b16 %v56
  %v67 = vunpack.c.l.b16 %v57
  %v68 = vunpack.c.h.b16 %v57
  %v69 = vpack.c.b16 %v67, %v65
  %v70 = vpack.c.b16 %v68, %v66
  %v90 = vunpack.c.l.b16 %v38
  %v91 = vunpack.c.l.b16 %v39
  %v92 = vunpack.c.l.b16 %v40
  %v93 = vunpack.c.l.b16 %v41
  %v94 = vunpack.c.l.b16 %v42
  %v95 = vunpack.c.l.b16 %v43
  %v96 = vunpack.c.l.b16 %v44
  %v97 = vunpack.c.l.b16 %v45
  %v98 = vunpack.c.l.b16 %v46
  %v99 = vunpack.c.l.b16 %v47
  %v100 = vunpack.c.l.b16 %v48
  %v101 = vunpack.c.l.b16 %v49
  %v102 = vunpack.c.l.b16 %v50
  %v103 = vunpack.c.l.b16 %v51
  %v104 = vunpack.c.l.b16 %v52
  %v105 = vunpack.c.l.b16 %v53
  %v106 = vunpack.c.l.b16 %v54
  %v107 = vunpack.c.l.b16 %v55
  %v108 = vpack.c.b16 %v91, %v90
  %v109 = vpack.c.b16 %v93, %v92
  %v110 = vpack.c.b16 %v95, %v94
  %v111 = vpack.c.b16 %v97, %v96
  %v112 = vpack.c.b16 %v99, %v98
  %v113 = vpack.c.b16 %v101, %v100
  %v114 = vpack.c.b16 %v103, %v102
  %v115 = vpack.c.b16 %v105, %v104
  %v116 = vpack.c.b16 %v107, %v106
  %vm126 = vcmask 130048
  %v128 = vsel %vm126, %v70, 0
  %130 = vmatprep.subr.bf16.mxu0 0
  %131 = vmatpush1.bf16.msra.mxu0 %v115
  %132 = vmatprep.subr.bf16.mxu0 0
  %133 = vmatpush1.bf16.msra.mxu0 %v114
  %134 = vmatprep.subr.bf16.mxu0 0
  %135 = vmatpush1.bf16.msra.mxu0 %v113
  %136 = vmatprep.subr.bf16.mxu0 0
  %137 = vmatpush1.bf16.msra.mxu0 %v112
  %138 = vmatprep.subr.bf16.mxu0 0
  %139 = vmatpush1.bf16.msra.mxu0 %v111
  %140 = vmatprep.subr.bf16.mxu0 0
  %141 = vmatpush1.bf16.msra.mxu0 %v110
  %142 = vmatprep.subr.bf16.mxu0 0
  %143 = vmatpush1.bf16.msra.mxu0 %v109
  %144 = vmatprep.subr.bf16.mxu0 0
  %145 = vmatpush1.bf16.msra.mxu0 %v108
  %146 = vmatprep.subr.bf16.mxu0 0
  %147 = vmatpush2.bf16.msra.mxu0 0
  %148 = vmatprep.subr.bf16.mxu0 0
  %149 = vmatpush2.bf16.msra.mxu0 0
  %150 = vmatprep.subr.bf16.mxu0 0
  %151 = vmatpush2.bf16.msra.mxu0 0
  %152 = vmatprep.subr.bf16.mxu0 0
  %153 = vmatpush2.bf16.msra.mxu0 0
  %154 = vmatprep.subr.bf16.mxu0 0
  %155 = vmatpush2.bf16.msra.mxu0 0
  %156 = vmatprep.subr.bf16.mxu0 0
  %157 = vmatpush2.bf16.msra.mxu0 0
  %158 = vmatprep.subr.bf16.mxu0 0
  %159 = vmatpush2.bf16.msra.mxu0 0
  %160 = vmatprep.subr.bf16.mxu0 0
  %161 = vmatpush2.bf16.msra.mxu0 %v116
  %162 = vmatprep.mubr.bf16.mxu0 %v128
  %163 = vmatmul.mubr.bf16.gmra.mxu0 %v69
  %v164 = vpop.f32.mrf.mxu0
  %v165 = vadd.f32 0.0, %v164
  %v166 = vpop.f32.mrf.mxu0
  %v167 = vpop.f32.mrf.mxu0
  %v168 = vadd.f32 0.0, %v167
  %v169 = vpop.f32.mrf.mxu0
  %170 = vdwg.mxu0
  %171 = vadd.xlane.f32.xlu0 %v165
  %v172 = vpop.xlane.xlu0 %171
  %173 = vadd.xlane.f32.xlu0 %v168
  %v174 = vpop.xlane.xlu0 %173
  %v175 = vrcp.pop 128.0
  %v176 = vmul.f32 %v172, %v175
  %v177 = vmul.f32 %v174, %v175
  %v178 = vsub.f32 %v165, %v176
  %v179 = vsub.f32 %v168, %v177
  %v180 = vmul.f32 %v178, %v178
  %v181 = vmul.f32 %v179, %v179
  %182 = vadd.xlane.f32.xlu0 %v180
  %v183 = vpop.xlane.xlu0 %182
  %184 = vadd.xlane.f32.xlu0 %v181
  %v185 = vpop.xlane.xlu0 %184
  %v186 = vmul.f32 %v183, %v175
  %v187 = vmul.f32 %v185, %v175
  %v188 = vadd.f32 %v186, 1e-05
  %v189 = vadd.f32 %v187, 1e-05
  %v190 = vrsqrt.pop %v188
  %v191 = vrsqrt.pop %v189
  %v192 = vmul.f32 %v58, %v190
  %v193 = vmul.f32 %v59, %v191
  %v194 = vmul.f32 %v176, %v192
  %v195 = vmul.f32 %v177, %v193
  %198 = vrot.lane.b32.xlu0 %v194, 1
  %v199 = vpop.permute.xlu0 %198
  %200 = vrot.lane.b32.xlu0 %v195, 1
  %v201 = vpop.permute.xlu0 %200
  %v204 = vsub.f32 %v58, %v199
  %v205 = vsub.f32 %v59, %v201
  %207 = vset.pattern.permute.xlu0 0
  %208 = vperm.xlu0 %207, %v192
  %v209 = vpop.permute.xlu0 %208
  %212 = vset.pattern.permute.xlu0 0
  %213 = vperm.xlu0 %212, %v193
  %v214 = vpop.permute.xlu0 %213
  %v216 = vmul.f32 %v165, %v209
  %v217 = vmul.f32 %v168, %v214
  %219 = vset.pattern.permute.xlu0 1
  %220 = vperm.xlu0 %219, %v204
  %v221 = vpop.permute.xlu0 %220
  %224 = vset.pattern.permute.xlu0 1
  %225 = vperm.xlu0 %224, %v205
  %v226 = vpop.permute.xlu0 %225
  %v228 = vadd.f32 %v216, %v221
  %v229 = vadd.f32 %v217, %v226
  %v230 = vmax.f32 %v228, 0.0
  %v231 = vmax.f32 %v229, 0.0
  %v232 = vpack.c.bf16 %v231, %v230
  %v233 = vpack.c.bf16 %v62, %v62
  %v236 = vunpack.c.l.b16 %v36
  %v237 = vunpack.c.l.b16 %v37
  %v238 = vpack.c.b16 %v237, %v236
  %vm239 = vcmask 64512
  %v241 = vsel %vm239, %v238, 0
  %vm243 = vcmask 1043456
  %v245 = vsel %vm243, %v233, 0
  %247 = vmatprep.subr.bf16.mxu0 0
  %248 = vmatpush1.bf16.msra.mxu0 0
  %249 = vmatprep.subr.bf16.mxu0 0
  %250 = vmatpush1.bf16.msra.mxu0 0
  %251 = vmatprep.subr.bf16.mxu0 0
  %252 = vmatpush1.bf16.msra.mxu0 0
  %253 = vmatprep.subr.bf16.mxu0 0
  %254 = vmatpush1.bf16.msra.mxu0 0
  %255 = vmatprep.subr.bf16.mxu0 0
  %256 = vmatpush1.bf16.msra.mxu0 0
  %257 = vmatprep.subr.bf16.mxu0 0
  %258 = vmatpush1.bf16.msra.mxu0 0
  %259 = vmatprep.subr.bf16.mxu0 0
  %260 = vmatpush1.bf16.msra.mxu0 0
  %261 = vmatprep.subr.bf16.mxu0 0
  %262 = vmatpush1.bf16.msra.mxu0 %v245
  %263 = vmatprep.subr.bf16.mxu0 0
  %264 = vmatpush2.bf16.msra.mxu0 0
  %265 = vmatprep.subr.bf16.mxu0 0
  %266 = vmatpush2.bf16.msra.mxu0 0
  %267 = vmatprep.subr.bf16.mxu0 0
  %268 = vmatpush2.bf16.msra.mxu0 0
  %269 = vmatprep.subr.bf16.mxu0 0
  %270 = vmatpush2.bf16.msra.mxu0 0
  %271 = vmatprep.subr.bf16.mxu0 0
  %272 = vmatpush2.bf16.msra.mxu0 0
  %273 = vmatprep.subr.bf16.mxu0 0
  %274 = vmatpush2.bf16.msra.mxu0 0
  %275 = vmatprep.subr.bf16.mxu0 0
  %276 = vmatpush2.bf16.msra.mxu0 0
  %277 = vmatprep.subr.bf16.mxu0 0
  %278 = vmatpush2.bf16.msra.mxu0 0
  %279 = vmatprep.mubr.bf16.mxu0 0
  %280 = vmatmul.mubr.bf16.gmra.mxu0 %v241
  %v281 = vpop.f32.mrf.mxu0
  %v282 = vadd.f32 0.0, %v281
  %v283 = vpop.f32.mrf.mxu0
  %v284 = vpop.f32.mrf.mxu0
  %v285 = vadd.f32 0.0, %v284
  %v286 = vpop.f32.mrf.mxu0
  %287 = vdwg.mxu0
  %v290 = vunpack.c.l.b16 %v60
  %v291 = vunpack.c.l.b16 %v61
  %v292 = vpack.c.b16 %v291, %v290
  %v294 = vsel %vm126, %v292, 0
  %296 = vmatprep.subr.bf16.mxu0 0
  %297 = vmatpush1.bf16.msra.mxu0 0
  %298 = vmatprep.subr.bf16.mxu0 0
  %299 = vmatpush1.bf16.msra.mxu0 0
  %300 = vmatprep.subr.bf16.mxu0 0
  %301 = vmatpush1.bf16.msra.mxu0 0
  %302 = vmatprep.subr.bf16.mxu0 0
  %303 = vmatpush1.bf16.msra.mxu0 0
  %304 = vmatprep.subr.bf16.mxu0 0
  %305 = vmatpush1.bf16.msra.mxu0 0
  %306 = vmatprep.subr.bf16.mxu0 0
  %307 = vmatpush1.bf16.msra.mxu0 0
  %308 = vmatprep.subr.bf16.mxu0 0
  %309 = vmatpush1.bf16.msra.mxu0 0
  %310 = vmatprep.subr.bf16.mxu0 0
  %311 = vmatpush1.bf16.msra.mxu0 %v232
  %312 = vmatprep.subr.bf16.mxu0 0
  %313 = vmatpush2.bf16.msra.mxu0 0
  %314 = vmatprep.subr.bf16.mxu0 0
  %315 = vmatpush2.bf16.msra.mxu0 0
  %316 = vmatprep.subr.bf16.mxu0 0
  %317 = vmatpush2.bf16.msra.mxu0 0
  %318 = vmatprep.subr.bf16.mxu0 0
  %319 = vmatpush2.bf16.msra.mxu0 0
  %320 = vmatprep.subr.bf16.mxu0 0
  %321 = vmatpush2.bf16.msra.mxu0 0
  %322 = vmatprep.subr.bf16.mxu0 0
  %323 = vmatpush2.bf16.msra.mxu0 0
  %324 = vmatprep.subr.bf16.mxu0 0
  %325 = vmatpush2.bf16.msra.mxu0 0
  %326 = vmatprep.subr.bf16.mxu0 0
  %327 = vmatpush2.bf16.msra.mxu0 0
  %328 = vmatprep.mubr.bf16.mxu0 0
  %329 = vmatmul.mubr.bf16.gmra.mxu0 %v294
  %v330 = vpop.f32.mrf.mxu0
  %v331 = vadd.f32 %v282, %v330
  %v332 = vpop.f32.mrf.mxu0
  %v333 = vpop.f32.mrf.mxu0
  %v334 = vadd.f32 %v285, %v333
  %v335 = vpop.f32.mrf.mxu0
  %336 = vdwg.mxu0
  %v337 = vld [vmem:[%s6] sm:$0xff]
  %v338 = vld [vmem:[%s6 + $0x8] sm:$0xff]
  %339 = vadd.xlane.f32.xlu0 %v331
  %v340 = vpop.xlane.xlu0 %339
  %341 = vadd.xlane.f32.xlu0 %v334
  %v342 = vpop.xlane.xlu0 %341
  %v343 = vmul.f32 %v340, %v175
  %v344 = vmul.f32 %v342, %v175
  %v345 = vsub.f32 %v331, %v343
  %v346 = vsub.f32 %v334, %v344
  %v347 = vmul.f32 %v345, %v345
  %v348 = vmul.f32 %v346, %v346
  %349 = vadd.xlane.f32.xlu0 %v347
  %v350 = vpop.xlane.xlu0 %349
  %351 = vadd.xlane.f32.xlu0 %v348
  %v352 = vpop.xlane.xlu0 %351
  %v353 = vmul.f32 %v350, %v175
  %v354 = vmul.f32 %v352, %v175
  %v355 = vadd.f32 %v353, 1e-05
  %v356 = vadd.f32 %v354, 1e-05
  %v357 = vrsqrt.pop %v355
  %v358 = vrsqrt.pop %v356
  %v359 = vmul.f32 %v337, %v357
  %v360 = vmul.f32 %v338, %v358
  %v361 = vmul.f32 %v343, %v359
  %v362 = vmul.f32 %v344, %v360
  %365 = vrot.lane.b32.xlu0 %v361, 1
  %v366 = vpop.permute.xlu0 %365
  %367 = vrot.lane.b32.xlu0 %v362, 1
  %v368 = vpop.permute.xlu0 %367
  %v371 = vsub.f32 %v337, %v366
  %v372 = vsub.f32 %v338, %v368
  %374 = vset.pattern.permute.xlu0 0
  %375 = vperm.xlu0 %374, %v359
  %v376 = vpop.permute.xlu0 %375
  %379 = vset.pattern.permute.xlu0 0
  %380 = vperm.xlu0 %379, %v360
  %v381 = vpop.permute.xlu0 %380
  %v383 = vmul.f32 %v331, %v376
  %v384 = vmul.f32 %v334, %v381
  %386 = vset.pattern.permute.xlu0 1
  %387 = vperm.xlu0 %386, %v371
  %v388 = vpop.permute.xlu0 %387
  %391 = vset.pattern.permute.xlu0 1
  %392 = vperm.xlu0 %391, %v372
  %v393 = vpop.permute.xlu0 %392
  %v395 = vadd.f32 %v383, %v388
  %v396 = vadd.f32 %v384, %v393
  %v397 = vmax.f32 %v395, 0.0
  %v398 = vmax.f32 %v396, 0.0
  %v399 = vld [vmem:[%s7] sm:$0xff]
  %v400 = vld [vmem:[%s7 + $0x8] sm:$0xff]
  %v401 = vld [vmem:[%s7 + $0x10] sm:$0xff]
  %v402 = vld [vmem:[%s7 + $0x18] sm:$0xff]
  %v403 = vld [vmem:[%s7 + $0x20] sm:$0xff]
  %v404 = vld [vmem:[%s7 + $0x28] sm:$0xff]
  %v405 = vld [vmem:[%s7 + $0x30] sm:$0xff]
  %v406 = vld [vmem:[%s7 + $0x38] sm:$0xff]
  %v407 = vld [vmem:[%s7 + $0x40] sm:$0xff]
  %v408 = vld [vmem:[%s7 + $0x48] sm:$0xff]
  %v409 = vld [vmem:[%s7 + $0x50] sm:$0xff]
  %v410 = vld [vmem:[%s7 + $0x58] sm:$0xff]
  %v411 = vld [vmem:[%s7 + $0x60] sm:$0xff]
  %v412 = vld [vmem:[%s7 + $0x68] sm:$0xff]
  %v413 = vld [vmem:[%s7 + $0x70] sm:$0xff]
  %v414 = vld [vmem:[%s7 + $0x78] sm:$0xff]
  %415 = vmatprep.subr.mxu0 0.0
  %416 = vmatpush1.msra.mxu0 %v414
  %417 = vmatprep.subr.mxu0 0.0
  %418 = vmatpush1.msra.mxu0 %v413
  %419 = vmatprep.subr.mxu0 0.0
  %420 = vmatpush1.msra.mxu0 %v412
  %421 = vmatprep.subr.mxu0 0.0
  %422 = vmatpush1.msra.mxu0 %v411
  %423 = vmatprep.subr.mxu0 0.0
  %424 = vmatpush1.msra.mxu0 %v410
  %425 = vmatprep.subr.mxu0 0.0
  %426 = vmatpush1.msra.mxu0 %v409
  %427 = vmatprep.subr.mxu0 0.0
  %428 = vmatpush1.msra.mxu0 %v408
  %429 = vmatprep.subr.mxu0 0.0
  %430 = vmatpush1.msra.mxu0 %v407
  %431 = vmatprep.subr.mxu0 0.0
  %432 = vmatpush1.msra.mxu0 %v406
  %433 = vmatprep.subr.mxu0 0.0
  %434 = vmatpush1.msra.mxu0 %v405
  %435 = vmatprep.subr.mxu0 0.0
  %436 = vmatpush1.msra.mxu0 %v404
  %437 = vmatprep.subr.mxu0 0.0
  %438 = vmatpush1.msra.mxu0 %v403
  %439 = vmatprep.subr.mxu0 0.0
  %440 = vmatpush1.msra.mxu0 %v402
  %441 = vmatprep.subr.mxu0 0.0
  %442 = vmatpush1.msra.mxu0 %v401
  %443 = vmatprep.subr.mxu0 0.0
  %444 = vmatpush1.msra.mxu0 %v400
  %445 = vmatprep.subr.mxu0 0.0
  %446 = vmatpush1.msra.mxu0 %v399
  %447 = vmatprep.subr.mxu0 0.0
  %448 = vmatpush2.msra.mxu0 0.0
  %449 = vmatprep.subr.mxu0 0.0
  %450 = vmatpush2.msra.mxu0 0.0
  %451 = vmatprep.subr.mxu0 0.0
  %452 = vmatpush2.msra.mxu0 0.0
  %453 = vmatprep.subr.mxu0 0.0
  %454 = vmatpush2.msra.mxu0 0.0
  %455 = vmatprep.subr.mxu0 0.0
  %456 = vmatpush2.msra.mxu0 0.0
  %457 = vmatprep.subr.mxu0 0.0
  %458 = vmatpush2.msra.mxu0 0.0
  %459 = vmatprep.subr.mxu0 0.0
  %460 = vmatpush2.msra.mxu0 0.0
  %461 = vmatprep.subr.mxu0 0.0
  %462 = vmatpush2.msra.mxu0 0.0
  %463 = vmatprep.subr.mxu0 0.0
  %464 = vmatpush2.msra.mxu0 0.0
  %465 = vmatprep.subr.mxu0 0.0
  %466 = vmatpush2.msra.mxu0 0.0
  %467 = vmatprep.subr.mxu0 0.0
  %468 = vmatpush2.msra.mxu0 0.0
  %469 = vmatprep.subr.mxu0 0.0
  %470 = vmatpush2.msra.mxu0 0.0
  %471 = vmatprep.subr.mxu0 0.0
  %472 = vmatpush2.msra.mxu0 0.0
  %473 = vmatprep.subr.mxu0 0.0
  %474 = vmatpush2.msra.mxu0 0.0
  %475 = vmatprep.subr.mxu0 0.0
  %476 = vmatpush2.msra.mxu0 0.0
  %477 = vmatprep.subr.mxu0 0.0
  %478 = vmatpush2.msra.mxu0 0.0
  %479 = vmatprep.mubr.f32.mxu0 0.0
  %480 = vmatmul.mubr.f32.gmra.mxu0 %v397
  %v481 = vpop.f32.mrf.mxu0
  %v482 = vadd.f32 0.0, %v481
  %v483 = vpop.f32.mrf.mxu0
  %484 = vmatprep.mubr.f32.mxu0 0.0
  %485 = vmatmul.mubr.f32.gmra.mxu0 %v398
  %v486 = vpop.f32.mrf.mxu0
  %v487 = vadd.f32 0.0, %v486
  %v488 = vpop.f32.mrf.mxu0
  %489 = vdwg.mxu0
  %v490 = vld [vmem:[%s8] sm:$0xff]
  %v491 = vld [vmem:[%s8 + $0x8] sm:$0x3]
  %v492 = vld [vmem:[%s9] sm:$0xff]
  %v493 = vld [vmem:[%s9 + $0x8] sm:$0x3]
  %495 = vset.pattern.permute.xlu0 0
  %496 = vperm.xlu0 %495, %v492
  %v497 = vpop.permute.xlu0 %496
  %500 = vset.pattern.permute.xlu0 0
  %501 = vperm.xlu0 %500, %v493
  %v502 = vpop.permute.xlu0 %501
  %v505 = vsel %vm126, %v490, 0
  %v508 = vsel %vm126, %v491, 0
  %510 = vmatprep.subr.mxu0 0.0
  %511 = vmatpush1.msra.mxu0 0.0
  %512 = vmatprep.subr.mxu0 0.0
  %513 = vmatpush1.msra.mxu0 0.0
  %514 = vmatprep.subr.mxu0 0.0
  %515 = vmatpush1.msra.mxu0 0.0
  %516 = vmatprep.subr.mxu0 0.0
  %517 = vmatpush1.msra.mxu0 0.0
  %518 = vmatprep.subr.mxu0 0.0
  %519 = vmatpush1.msra.mxu0 0.0
  %520 = vmatprep.subr.mxu0 0.0
  %521 = vmatpush1.msra.mxu0 0.0
  %522 = vmatprep.subr.mxu0 0.0
  %523 = vmatpush1.msra.mxu0 0.0
  %524 = vmatprep.subr.mxu0 0.0
  %525 = vmatpush1.msra.mxu0 0.0
  %526 = vmatprep.subr.mxu0 0.0
  %527 = vmatpush1.msra.mxu0 0.0
  %528 = vmatprep.subr.mxu0 0.0
  %529 = vmatpush1.msra.mxu0 0.0
  %530 = vmatprep.subr.mxu0 0.0
  %531 = vmatpush1.msra.mxu0 0.0
  %532 = vmatprep.subr.mxu0 0.0
  %533 = vmatpush1.msra.mxu0 0.0
  %534 = vmatprep.subr.mxu0 0.0
  %535 = vmatpush1.msra.mxu0 0.0
  %536 = vmatprep.subr.mxu0 0.0
  %537 = vmatpush1.msra.mxu0 0.0
  %538 = vmatprep.subr.mxu0 0.0
  %539 = vmatpush1.msra.mxu0 %v487
  %540 = vmatprep.subr.mxu0 0.0
  %541 = vmatpush1.msra.mxu0 %v482
  %542 = vmatprep.subr.mxu0 0.0
  %543 = vmatpush2.msra.mxu0 0.0
  %544 = vmatprep.subr.mxu0 0.0
  %545 = vmatpush2.msra.mxu0 0.0
  %546 = vmatprep.subr.mxu0 0.0
  %547 = vmatpush2.msra.mxu0 0.0
  %548 = vmatprep.subr.mxu0 0.0
  %549 = vmatpush2.msra.mxu0 0.0
  %550 = vmatprep.subr.mxu0 0.0
  %551 = vmatpush2.msra.mxu0 0.0
  %552 = vmatprep.subr.mxu0 0.0
  %553 = vmatpush2.msra.mxu0 0.0
  %554 = vmatprep.subr.mxu0 0.0
  %555 = vmatpush2.msra.mxu0 0.0
  %556 = vmatprep.subr.mxu0 0.0
  %557 = vmatpush2.msra.mxu0 0.0
  %558 = vmatprep.subr.mxu0 0.0
  %559 = vmatpush2.msra.mxu0 0.0
  %560 = vmatprep.subr.mxu0 0.0
  %561 = vmatpush2.msra.mxu0 0.0
  %562 = vmatprep.subr.mxu0 0.0
  %563 = vmatpush2.msra.mxu0 0.0
  %564 = vmatprep.subr.mxu0 0.0
  %565 = vmatpush2.msra.mxu0 0.0
  %566 = vmatprep.subr.mxu0 0.0
  %567 = vmatpush2.msra.mxu0 0.0
  %568 = vmatprep.subr.mxu0 0.0
  %569 = vmatpush2.msra.mxu0 0.0
  %570 = vmatprep.subr.mxu0 0.0
  %571 = vmatpush2.msra.mxu0 0.0
  %572 = vmatprep.subr.mxu0 0.0
  %573 = vmatpush2.msra.mxu0 0.0
  %574 = vmatprep.mubr.f32.mxu0 0.0
  %575 = vmatmul.mubr.f32.gmra.mxu0 %v505
  %v576 = vpop.f32.mrf.mxu0
  %v577 = vadd.f32 %v497, %v576
  %v578 = vpop.f32.mrf.mxu0
  %579 = vmatprep.mubr.f32.mxu0 0.0
  %580 = vmatmul.mubr.f32.gmra.mxu0 %v508
  %v581 = vpop.f32.mrf.mxu0
  %v582 = vadd.f32 %v502, %v581
  %v583 = vpop.f32.mrf.mxu0
  %584 = vdwg.mxu0
  %vm585 = vcmask 15360
  %586 = vst.msk [vmem:[%s10] sm:$0xff] %vm585, %v577
  %vm587 = vcmask 9216
  %588 = vst.msk [vmem:[%s10 + $0x8] sm:$0x3] %vm587, %v582
  // Predicated region
  $region42: #{model_forward.5} parent=0 // pred_check
    _
  $region43: #{model_forward.5} parent=0 // pred_check_branch
    %590 = sbr.rel (0) target = $region45
  $region44: #{model_forward.5} parent=0 // pred_region
    _
  $region45: #{model_forward.5} parent=0 // pred_fallthru
    _
  // Predicated region
  $region46: #{model_forward.5} parent=0 // pred_check
    _
  $region47: #{model_forward.5} parent=0 // pred_check_branch
    %592 = sbr.rel (0) target = $region49
  $region48: #{model_forward.5} parent=0 // pred_region
    _
  $region49: #{model_forward.5} parent=0 // pred_fallthru
    _

</llo_original>
